<compile_context>
chip_gen: v7x
topology: tpu7x:2x2x1
jax: 0.10.0
libtpu: 0.0.40
codegen_flags: <defaults>
</compile_context>

<pallas_src>
import numpy as np
import jax
import jax.numpy as jnp
from jax.experimental import pallas as pl
from jax.experimental.pallas import tpu as pltpu


# ----------------------------------------------------------------------------
# Fixed LeNet geometry (28x28 single-channel input, implied by fc1 = 16*4*4).
# ----------------------------------------------------------------------------
H0 = W0 = 28          # input spatial size
K = 5                 # conv kernel size
C1, C2 = 6, 16        # conv output channels
H1 = W1 = H0 - K + 1  # 24 (conv1 output)
P1 = H1 // 2          # 12 (pool1 output)
H2 = W2 = P1 - K + 1  # 8  (conv2 output)
P2 = H2 // 2          # 4  (pool2 output)
N1 = C1 * W1          # 144  conv1 packed lane width   (lane = co*24 + ow)
M1 = C1 * P1          # 72   pool1 packed lane width   (lane = ci*12 + w)
N2 = C2 * W2          # 128  conv2 packed lane width   (lane = co*8  + ow)
M2 = C2 * P2          # 64   pool2 packed lane width   (lane = co*4  + w)
F1, F2, F3 = 120, 84, 10

_W_ORDER = ("t1c", "b1", "sew1", "sow1", "t2c", "b2", "sew2", "sow2",
            "wf1", "bf1", "wf2", "bf2", "wf3", "bf3")


# ----------------------------------------------------------------------------
# The fused kernel (per grid step: one image)
# ----------------------------------------------------------------------------
def _lenet_kernel(x_ref, t1c_ref, b1_ref, sew1_ref, sow1_ref,
                  t2c_ref, b2_ref, sew2_ref, sow2_ref,
                  wf1_ref, bf1_ref, wf2_ref, bf2_ref, wf3_ref, bf3_ref,
                  out_ref, s1_ref, s2_ref):
    bt = x_ref.shape[0]                       # batch tile (1 per grid step)
    bf16 = jnp.bfloat16
    f32 = jnp.float32

    # ---- conv1 + bias + sigmoid: one deep-K matmul over a row-im2col LHS ----
    # xc1[row, ki*28 + j] = x[oh+ki, j]    with row = b*24 + oh
    xc1 = jnp.concatenate(
        [x_ref[:, ki:ki + H1, :].reshape(bt * H1, W0) for ki in range(K)],
        axis=-1)                                                  # (bt*24, 140)
    y1 = jnp.dot(xc1.astype(bf16), t1c_ref[...],
                 preferred_element_type=f32)                      # (bt*24, 144)
    a1 = jax.nn.sigmoid(y1 + b1_ref[...]).astype(bf16)

    # ---- pool1, width (lane) half: even/odd column selectors + max ----------
    p1c = jnp.maximum(
        jnp.dot(a1, sew1_ref[...], preferred_element_type=f32),
        jnp.dot(a1, sow1_ref[...], preferred_element_type=f32))   # (bt*24, 72)
    s1_ref[...] = p1c.reshape(bt, H1, M1)

    # ---- pool1 height half fused into the conv2 row-im2col gather -----------
    # p1[row oh+ki] = max(p1c[2*(oh+ki)], p1c[2*(oh+ki)+1])  via stride-2 reads.
    parts = []
    for ki in range(K):
        ev = s1_ref[:, pl.ds(2 * ki, H2, stride=2), :]            # (bt, 8, 72)
        od = s1_ref[:, pl.ds(2 * ki + 1, H2, stride=2), :]
        parts.append(jnp.maximum(ev, od).reshape(bt * H2, M1))
    xc2 = jnp.concatenate(parts, axis=-1)                         # (bt*8, 360)

    # ---- conv2 + bias + sigmoid ---------------------------------------------
    y2 = jnp.dot(xc2.astype(bf16), t2c_ref[...],
                 preferred_element_type=f32)                      # (bt*8, 128)
    a2 = jax.nn.sigmoid(y2 + b2_ref[...]).astype(bf16)

    # ---- pool2, width half ---------------------------------------------------
    p2c = jnp.maximum(
        jnp.dot(a2, sew2_ref[...], preferred_element_type=f32),
        jnp.dot(a2, sow2_ref[...], preferred_element_type=f32))   # (bt*8, 64)
    s2_ref[...] = p2c.reshape(bt, H2, M2)

    # ---- pool2 height half + flatten to 256 lanes (order r*64 + co*4 + w) ---
    flat = jnp.concatenate(
        [jnp.maximum(s2_ref[:, 2 * r, :], s2_ref[:, 2 * r + 1, :])
         for r in range(P2)], axis=-1)                            # (bt, 256)

    # ---- fc1 / fc2 / fc3 (single matmuls, bf16 in, f32 accumulate) ----------
    h = jnp.dot(flat.astype(bf16), wf1_ref[...], preferred_element_type=f32)
    h = jax.nn.sigmoid(h + bf1_ref[...])                          # (bt, 120)
    h = jnp.dot(h.astype(bf16), wf2_ref[...], preferred_element_type=f32)
    h = jax.nn.sigmoid(h + bf2_ref[...])                          # (bt, 84)
    o = jnp.dot(h.astype(bf16), wf3_ref[...], preferred_element_type=f32)
    o = o + bf3_ref[...]                                          # (bt, 10)
    out_ref[...] = o.reshape(bt, 1, F3)


# ----------------------------------------------------------------------------
# Pallas wrapper: grid over batch (parallel), weights fetched once
# ----------------------------------------------------------------------------
def _const_spec(arr):
    zeros = (0,) * arr.ndim
    return pl.BlockSpec(arr.shape, lambda i: zeros)


def lenet_forward(kparams, image):
    B = image.shape[0]
    x = image.reshape(B, H0, W0)                   # drop the channel dim (C=1)
    weights = tuple(kparams[k] for k in _W_ORDER)

    in_specs = [pl.BlockSpec((1, H0, W0), lambda i: (i, 0, 0))]
    in_specs += [_const_spec(w) for w in weights]

    out = pl.pallas_call(
        _lenet_kernel,
        out_shape=jax.ShapeDtypeStruct((B, 1, F3), jnp.float32),
        grid=(B,),
        in_specs=in_specs,
        out_specs=pl.BlockSpec((1, 1, F3), lambda i: (i, 0, 0)),
        scratch_shapes=[pltpu.VMEM((1, H1, M1), jnp.float32),   # pool1 cols
                        pltpu.VMEM((1, H2, M2), jnp.float32)],  # pool2 cols
        compiler_params=pltpu.CompilerParams(
            dimension_semantics=("parallel",)),
    )(x, *weights)
    return out.reshape(B, F3)


# ----------------------------------------------------------------------------
# Parameters (deterministic, synthetic) — raw PyTorch layout
# ----------------------------------------------------------------------------
def init_lenet_params(key):
    ks = jax.random.split(key, 10)
    scale = 0.1
    return {
        "conv1_w": jax.random.normal(ks[0], (C1, 1, K, K), jnp.float32) * scale,
        "conv1_b": jax.random.normal(ks[1], (C1,), jnp.float32) * scale,
        "conv2_w": jax.random.normal(ks[2], (C2, C1, K, K), jnp.float32) * scale,
        "conv2_b": jax.random.normal(ks[3], (C2,), jnp.float32) * scale,
        "fc1_w": jax.random.normal(ks[4], (F1, C2 * P2 * P2), jnp.float32) * scale,
        "fc1_b": jax.random.normal(ks[5], (F1,), jnp.float32) * scale,
        "fc2_w": jax.random.normal(ks[6], (F2, F1), jnp.float32) * scale,
        "fc2_b": jax.random.normal(ks[7], (F2,), jnp.float32) * scale,
        "fc3_w": jax.random.normal(ks[8], (F3, F2), jnp.float32) * scale,
        "fc3_b": jax.random.normal(ks[9], (F3,), jnp.float32) * scale,
    }


def prepare_kernel_params(params):
    """One-time (outside jit) repack of PyTorch-layout weights into kernel
    operands: merged banded conv tables (bf16), width-pool 0/1 selectors
    (bf16), permuted/pre-transposed fc weights (bf16), f32 bias rows.
    Everything is 2-D and batch-independent."""
    f32 = np.float32
    w1 = np.asarray(params["conv1_w"], f32)
    b1 = np.asarray(params["conv1_b"], f32)
    w2 = np.asarray(params["conv2_w"], f32)
    b2 = np.asarray(params["conv2_b"], f32)
    fw1 = np.asarray(params["fc1_w"], f32)
    fb1 = np.asarray(params["fc1_b"], f32)
    fw2 = np.asarray(params["fc2_w"], f32)
    fb2 = np.asarray(params["fc2_b"], f32)
    fw3 = np.asarray(params["fc3_w"], f32)
    fb3 = np.asarray(params["fc3_b"], f32)

    # conv1 banded table, all 5 kernel rows concatenated along the contraction
    # dim: y1[oh, co*24+ow] = sum_{ki,j} xc1[oh, ki*28+j] * t1c[ki*28+j, co*24+ow]
    t1c = np.zeros((K * W0, N1), f32)
    for ki in range(K):
        for co in range(C1):
            for ow in range(W1):
                for kj in range(K):
                    t1c[ki * W0 + ow + kj, co * W1 + ow] = w1[co, 0, ki, kj]
    b1r = np.zeros((1, N1), f32)
    for co in range(C1):
        b1r[0, co * W1:(co + 1) * W1] = b1[co]

    # conv2 banded table over pool1's packed lanes (ci*12 + w).
    t2c = np.zeros((K * M1, N2), f32)
    for ki in range(K):
        for co in range(C2):
            for ci in range(C1):
                for ow in range(W2):
                    for kj in range(K):
                        t2c[ki * M1 + ci * P1 + ow + kj, co * W2 + ow] = \
                            w2[co, ci, ki, kj]
    b2r = np.zeros((1, N2), f32)
    for co in range(C2):
        b2r[0, co * W2:(co + 1) * W2] = b2[co]

    # width (lane) 2x2 max-pool selectors: even / odd column of each pair.
    def col_selectors(channels, w_in):
        w_out = w_in // 2
        se = np.zeros((channels * w_in, channels * w_out), f32)
        so = np.zeros((channels * w_in, channels * w_out), f32)
        for c in range(channels):
            for w in range(w_out):
                se[c * w_in + 2 * w, c * w_out + w] = 1.0
                so[c * w_in + 2 * w + 1, c * w_out + w] = 1.0
        return se, so

    sew1, sow1 = col_selectors(C1, W1)      # (144, 72)
    sew2, sow2 = col_selectors(C2, W2)      # (128, 64)

    # fc1 repacked for the kernel's flatten order (r*64 + co*4 + w); PyTorch
    # flatten order of (C, H, W) is co*16 + r*4 + w.
    wf1 = np.zeros((P2 * M2, F1), f32)      # (256, 120)
    for r in range(P2):
        for co in range(C2):
            for w in range(P2):
                wf1[r * M2 + co * P2 + w, :] = fw1[:, co * (P2 * P2) + r * P2 + w]

    bf16 = jnp.bfloat16
    return {
        "t1c": jnp.asarray(t1c, bf16),
        "b1": jnp.asarray(b1r),
        "sew1": jnp.asarray(sew1, bf16), "sow1": jnp.asarray(sow1, bf16),
        "t2c": jnp.asarray(t2c, bf16),
        "b2": jnp.asarray(b2r),
        "sew2": jnp.asarray(sew2, bf16), "sow2": jnp.asarray(sow2, bf16),
        "wf1": jnp.asarray(wf1, bf16),
        "bf1": jnp.asarray(fb1.reshape(1, F1)),
        "wf2": jnp.asarray(np.ascontiguousarray(fw2.T), bf16),
        "bf2": jnp.asarray(fb2.reshape(1, F2)),
        "wf3": jnp.asarray(np.ascontiguousarray(fw3.T), bf16),
        "bf3": jnp.asarray(fb3.reshape(1, F3)),
    }


# ----------------------------------------------------------------------------
# Pure-jnp reference (mirrors the PyTorch module) for a numerical sanity check
# ----------------------------------------------------------------------------
def lenet_reference(params, image):
    def conv2d(x, w, b):
        bsz, cin, hh, ww = x.shape
        cout, _, kh, kw = w.shape
        oh, ow = hh - kh + 1, ww - kw + 1
        patches = []
        for i in range(kh):
            for j in range(kw):
                patches.append(x[:, :, i:i + oh, j:j + ow])
        p = jnp.stack(patches, axis=2)                              # (B,C,kh*kw,oh,ow)
        p = p.transpose(0, 3, 4, 1, 2).reshape(bsz * oh * ow, cin * kh * kw)
        y = p @ w.reshape(cout, cin * kh * kw).T + b[None, :]
        return y.reshape(bsz, oh, ow, cout).transpose(0, 3, 1, 2)

    def maxpool2(x):
        bsz, c, hh, ww = x.shape
        return x.reshape(bsz, c, hh // 2, 2, ww // 2, 2).max(axis=(3, 5))

    x = maxpool2(jax.nn.sigmoid(conv2d(image, params["conv1_w"], params["conv1_b"])))
    x = maxpool2(jax.nn.sigmoid(conv2d(x, params["conv2_w"], params["conv2_b"])))
    feat = x.reshape(image.shape[0], -1)
    h = jax.nn.sigmoid(feat @ params["fc1_w"].T + params["fc1_b"])
    h = jax.nn.sigmoid(h @ params["fc2_w"].T + params["fc2_b"])
    return h @ params["fc3_w"].T + params["fc3_b"]


# ----------------------------------------------------------------------------
# Demo / self-check
# ----------------------------------------------------------------------------
if __name__ == "__main__":
    key = jax.random.PRNGKey(0)
    k_params, k_input = jax.random.split(key)

    params = init_lenet_params(k_params)
    batch = 2
    image = jax.random.normal(k_input, (batch, 1, H0, W0), jnp.float32)

    kparams = prepare_kernel_params(params)          # once, outside jit

    logits = jax.jit(lenet_forward)(kparams, image)
    jax.block_until_ready(logits)

    assert logits.shape == (batch, F3)
    assert logits.dtype == jnp.float32

    ref = jax.jit(lenet_reference)(params, image)
    # bf16 MXU inputs with f32 accumulation: observed error ~1e-3.
    np.testing.assert_allclose(np.asarray(logits), np.asarray(ref),
                               rtol=2e-2, atol=2e-2)

    print("KERNEL_OK")
</pallas_src>

<mosaic_0001>
module attributes {stable_mosaic.version = 11 : i64} {
  func.func @_lenet_kernel(%arg0: i32, %arg1: memref<1x28x28xf32, #tpu.memory_space<vmem>>, %arg2: memref<140x144xbf16, #tpu.memory_space<vmem>>, %arg3: memref<1x144xf32, #tpu.memory_space<vmem>>, %arg4: memref<144x72xbf16, #tpu.memory_space<vmem>>, %arg5: memref<144x72xbf16, #tpu.memory_space<vmem>>, %arg6: memref<360x128xbf16, #tpu.memory_space<vmem>>, %arg7: memref<1x128xf32, #tpu.memory_space<vmem>>, %arg8: memref<128x64xbf16, #tpu.memory_space<vmem>>, %arg9: memref<128x64xbf16, #tpu.memory_space<vmem>>, %arg10: memref<256x120xbf16, #tpu.memory_space<vmem>>, %arg11: memref<1x120xf32, #tpu.memory_space<vmem>>, %arg12: memref<120x84xbf16, #tpu.memory_space<vmem>>, %arg13: memref<1x84xf32, #tpu.memory_space<vmem>>, %arg14: memref<84x10xbf16, #tpu.memory_space<vmem>>, %arg15: memref<1x10xf32, #tpu.memory_space<vmem>>, %arg16: memref<1x1x10xf32, #tpu.memory_space<vmem>>, %arg17: memref<1x24x72xf32, #tpu.memory_space<vmem>>, %arg18: memref<1x8x64xf32, #tpu.memory_space<vmem>>) attributes {dimension_semantics = [#tpu.dimension_semantics<parallel>], iteration_bounds = array<i64: 2>, scalar_prefetch = 0 : i64, scratch_operands = 2 : i64, tpu.core_type = #tpu.core_type<tc>, window_params = [{transform_indices = @transform_0, window_bounds = array<i64: 1, 28, 28>}, {pipeline_mode = #tpu.pipeline_mode<synchronous>, transform_indices = @transform_1, window_bounds = array<i64: 140, 144>}, {pipeline_mode = #tpu.pipeline_mode<synchronous>, transform_indices = @transform_2, window_bounds = array<i64: 1, 144>}, {pipeline_mode = #tpu.pipeline_mode<synchronous>, transform_indices = @transform_3, window_bounds = array<i64: 144, 72>}, {pipeline_mode = #tpu.pipeline_mode<synchronous>, transform_indices = @transform_4, window_bounds = array<i64: 144, 72>}, {pipeline_mode = #tpu.pipeline_mode<synchronous>, transform_indices = @transform_5, window_bounds = array<i64: 360, 128>}, {pipeline_mode = #tpu.pipeline_mode<synchronous>, transform_indices = @transform_6, window_bounds = array<i64: 1, 128>}, {pipeline_mode = #tpu.pipeline_mode<synchronous>, transform_indices = @transform_7, window_bounds = array<i64: 128, 64>}, {pipeline_mode = #tpu.pipeline_mode<synchronous>, transform_indices = @transform_8, window_bounds = array<i64: 128, 64>}, {pipeline_mode = #tpu.pipeline_mode<synchronous>, transform_indices = @transform_9, window_bounds = array<i64: 256, 120>}, {pipeline_mode = #tpu.pipeline_mode<synchronous>, transform_indices = @transform_10, window_bounds = array<i64: 1, 120>}, {pipeline_mode = #tpu.pipeline_mode<synchronous>, transform_indices = @transform_11, window_bounds = array<i64: 120, 84>}, {pipeline_mode = #tpu.pipeline_mode<synchronous>, transform_indices = @transform_12, window_bounds = array<i64: 1, 84>}, {pipeline_mode = #tpu.pipeline_mode<synchronous>, transform_indices = @transform_13, window_bounds = array<i64: 84, 10>}, {pipeline_mode = #tpu.pipeline_mode<synchronous>, transform_indices = @transform_14, window_bounds = array<i64: 1, 10>}, {transform_indices = @transform_15, window_bounds = array<i64: 1, 1, 10>}]} {
    %c0 = arith.constant 0 : index
    %c0_0 = arith.constant 0 : index
    %c0_1 = arith.constant 0 : index
    %0 = vector.load %arg1[%c0, %c0_0, %c0_1] : memref<1x28x28xf32, #tpu.memory_space<vmem>>, vector<1x24x28xf32>
    %1 = vector.shape_cast %0 : vector<1x24x28xf32> to vector<24x28xf32>
    %c0_2 = arith.constant 0 : index
    %c1 = arith.constant 1 : index
    %c0_3 = arith.constant 0 : index
    %2 = vector.load %arg1[%c0_2, %c1, %c0_3] : memref<1x28x28xf32, #tpu.memory_space<vmem>>, vector<1x24x28xf32>
    %3 = vector.shape_cast %2 : vector<1x24x28xf32> to vector<24x28xf32>
    %c0_4 = arith.constant 0 : index
    %c2 = arith.constant 2 : index
    %c0_5 = arith.constant 0 : index
    %4 = vector.load %arg1[%c0_4, %c2, %c0_5] : memref<1x28x28xf32, #tpu.memory_space<vmem>>, vector<1x24x28xf32>
    %5 = vector.shape_cast %4 : vector<1x24x28xf32> to vector<24x28xf32>
    %c0_6 = arith.constant 0 : index
    %c3 = arith.constant 3 : index
    %c0_7 = arith.constant 0 : index
    %6 = vector.load %arg1[%c0_6, %c3, %c0_7] : memref<1x28x28xf32, #tpu.memory_space<vmem>>, vector<1x24x28xf32>
    %7 = vector.shape_cast %6 : vector<1x24x28xf32> to vector<24x28xf32>
    %c0_8 = arith.constant 0 : index
    %c4 = arith.constant 4 : index
    %c0_9 = arith.constant 0 : index
    %8 = vector.load %arg1[%c0_8, %c4, %c0_9] : memref<1x28x28xf32, #tpu.memory_space<vmem>>, vector<1x24x28xf32>
    %9 = vector.shape_cast %8 : vector<1x24x28xf32> to vector<24x28xf32>
    %10 = tpu.concatenate %1, %3, %5, %7, %9 in 1 : vector<24x28xf32>, vector<24x28xf32>, vector<24x28xf32>, vector<24x28xf32>, vector<24x28xf32> -> vector<24x140xf32>
    %11 = arith.truncf %10 : vector<24x140xf32> to vector<24x140xbf16>
    %c0_10 = arith.constant 0 : index
    %c0_11 = arith.constant 0 : index
    %12 = vector.load %arg2[%c0_10, %c0_11] : memref<140x144xbf16, #tpu.memory_space<vmem>>, vector<140x144xbf16>
    %cst = arith.constant dense<0.000000e+00> : vector<24x144xf32>
    %13 = tpu.matmul %11, %12, %cst {dimension_numbers = #tpu.dot_dimension_numbers<[1], [0], [0], [1], [0, 0, 1, 1], [], []>} : vector<24x140xbf16>, vector<140x144xbf16>, vector<24x144xf32> -> vector<24x144xf32>
    %c0_12 = arith.constant 0 : index
    %c0_13 = arith.constant 0 : index
    %14 = vector.load %arg3[%c0_12, %c0_13] : memref<1x144xf32, #tpu.memory_space<vmem>>, vector<1x144xf32>
    %15 = vector.broadcast %14 : vector<1x144xf32> to vector<24x144xf32>
    %16 = arith.addf %13, %15 : vector<24x144xf32>
    %17 = arith.negf %16 : vector<24x144xf32>
    %18 = math.exp %17 : vector<24x144xf32>
    %cst_14 = arith.constant 1.000000e+00 : f32
    %19 = vector.broadcast %cst_14 : f32 to vector<24x144xf32>
    %20 = arith.addf %19, %18 : vector<24x144xf32>
    %21 = arith.divf %19, %20 : vector<24x144xf32>
    %22 = arith.truncf %21 : vector<24x144xf32> to vector<24x144xbf16>
    %c0_15 = arith.constant 0 : index
    %c0_16 = arith.constant 0 : index
    %23 = vector.load %arg4[%c0_15, %c0_16] : memref<144x72xbf16, #tpu.memory_space<vmem>>, vector<144x72xbf16>
    %cst_17 = arith.constant dense<0.000000e+00> : vector<24x72xf32>
    %24 = tpu.matmul %22, %23, %cst_17 {dimension_numbers = #tpu.dot_dimension_numbers<[1], [0], [0], [1], [0, 0, 1, 1], [], []>} : vector<24x144xbf16>, vector<144x72xbf16>, vector<24x72xf32> -> vector<24x72xf32>
    %c0_18 = arith.constant 0 : index
    %c0_19 = arith.constant 0 : index
    %25 = vector.load %arg5[%c0_18, %c0_19] : memref<144x72xbf16, #tpu.memory_space<vmem>>, vector<144x72xbf16>
    %cst_20 = arith.constant dense<0.000000e+00> : vector<24x72xf32>
    %26 = tpu.matmul %22, %25, %cst_20 {dimension_numbers = #tpu.dot_dimension_numbers<[1], [0], [0], [1], [0, 0, 1, 1], [], []>} : vector<24x144xbf16>, vector<144x72xbf16>, vector<24x72xf32> -> vector<24x72xf32>
    %27 = arith.maximumf %24, %26 : vector<24x72xf32>
    %28 = vector.shape_cast %27 : vector<24x72xf32> to vector<1x24x72xf32>
    %c0_21 = arith.constant 0 : index
    %c0_22 = arith.constant 0 : index
    %c0_23 = arith.constant 0 : index
    %29 = vector.load %arg17[%c0_21, %c0_22, %c0_23] : memref<1x24x72xf32, #tpu.memory_space<vmem>>, vector<1x24x72xf32>
    tpu.vector_store %arg17[%c0_21, %c0_22, %c0_23], %28 {strides = array<i32>} : memref<1x24x72xf32, #tpu.memory_space<vmem>>, vector<1x24x72xf32>,
    %c0_24 = arith.constant 0 : index
    %c0_25 = arith.constant 0 : index
    %c0_26 = arith.constant 0 : index
    %30 = tpu.strided_load %arg17[%c0_24, %c0_25, %c0_26] {strides = array<i32: 1, 2, 1>} : memref<1x24x72xf32, #tpu.memory_space<vmem>>, vector<1x8x72xf32>
    %c0_27 = arith.constant 0 : index
    %c1_28 = arith.constant 1 : index
    %c0_29 = arith.constant 0 : index
    %31 = tpu.strided_load %arg17[%c0_27, %c1_28, %c0_29] {strides = array<i32: 1, 2, 1>} : memref<1x24x72xf32, #tpu.memory_space<vmem>>, vector<1x8x72xf32>
    %32 = arith.maximumf %30, %31 : vector<1x8x72xf32>
    %33 = vector.shape_cast %32 : vector<1x8x72xf32> to vector<8x72xf32>
    %c0_30 = arith.constant 0 : index
    %c2_31 = arith.constant 2 : index
    %c0_32 = arith.constant 0 : index
    %34 = tpu.strided_load %arg17[%c0_30, %c2_31, %c0_32] {strides = array<i32: 1, 2, 1>} : memref<1x24x72xf32, #tpu.memory_space<vmem>>, vector<1x8x72xf32>
    %c0_33 = arith.constant 0 : index
    %c3_34 = arith.constant 3 : index
    %c0_35 = arith.constant 0 : index
    %35 = tpu.strided_load %arg17[%c0_33, %c3_34, %c0_35] {strides = array<i32: 1, 2, 1>} : memref<1x24x72xf32, #tpu.memory_space<vmem>>, vector<1x8x72xf32>
    %36 = arith.maximumf %34, %35 : vector<1x8x72xf32>
    %37 = vector.shape_cast %36 : vector<1x8x72xf32> to vector<8x72xf32>
    %c0_36 = arith.constant 0 : index
    %c4_37 = arith.constant 4 : index
    %c0_38 = arith.constant 0 : index
    %38 = tpu.strided_load %arg17[%c0_36, %c4_37, %c0_38] {strides = array<i32: 1, 2, 1>} : memref<1x24x72xf32, #tpu.memory_space<vmem>>, vector<1x8x72xf32>
    %c0_39 = arith.constant 0 : index
    %c5 = arith.constant 5 : index
    %c0_40 = arith.constant 0 : index
    %39 = tpu.strided_load %arg17[%c0_39, %c5, %c0_40] {strides = array<i32: 1, 2, 1>} : memref<1x24x72xf32, #tpu.memory_space<vmem>>, vector<1x8x72xf32>
    %40 = arith.maximumf %38, %39 : vector<1x8x72xf32>
    %41 = vector.shape_cast %40 : vector<1x8x72xf32> to vector<8x72xf32>
    %c0_41 = arith.constant 0 : index
    %c6 = arith.constant 6 : index
    %c0_42 = arith.constant 0 : index
    %42 = tpu.strided_load %arg17[%c0_41, %c6, %c0_42] {strides = array<i32: 1, 2, 1>} : memref<1x24x72xf32, #tpu.memory_space<vmem>>, vector<1x8x72xf32>
    %c0_43 = arith.constant 0 : index
    %c7 = arith.constant 7 : index
    %c0_44 = arith.constant 0 : index
    %43 = tpu.strided_load %arg17[%c0_43, %c7, %c0_44] {strides = array<i32: 1, 2, 1>} : memref<1x24x72xf32, #tpu.memory_space<vmem>>, vector<1x8x72xf32>
    %44 = arith.maximumf %42, %43 : vector<1x8x72xf32>
    %45 = vector.shape_cast %44 : vector<1x8x72xf32> to vector<8x72xf32>
    %c0_45 = arith.constant 0 : index
    %c8 = arith.constant 8 : index
    %c0_46 = arith.constant 0 : index
    %46 = tpu.strided_load %arg17[%c0_45, %c8, %c0_46] {strides = array<i32: 1, 2, 1>} : memref<1x24x72xf32, #tpu.memory_space<vmem>>, vector<1x8x72xf32>
    %c0_47 = arith.constant 0 : index
    %c9 = arith.constant 9 : index
    %c0_48 = arith.constant 0 : index
    %47 = tpu.strided_load %arg17[%c0_47, %c9, %c0_48] {strides = array<i32: 1, 2, 1>} : memref<1x24x72xf32, #tpu.memory_space<vmem>>, vector<1x8x72xf32>
    %48 = arith.maximumf %46, %47 : vector<1x8x72xf32>
    %49 = vector.shape_cast %48 : vector<1x8x72xf32> to vector<8x72xf32>
    %50 = tpu.concatenate %33, %37, %41, %45, %49 in 1 : vector<8x72xf32>, vector<8x72xf32>, vector<8x72xf32>, vector<8x72xf32>, vector<8x72xf32> -> vector<8x360xf32>
    %51 = arith.truncf %50 : vector<8x360xf32> to vector<8x360xbf16>
    %c0_49 = arith.constant 0 : index
    %c0_50 = arith.constant 0 : index
    %52 = vector.load %arg6[%c0_49, %c0_50] : memref<360x128xbf16, #tpu.memory_space<vmem>>, vector<360x128xbf16>
    %cst_51 = arith.constant dense<0.000000e+00> : vector<8x128xf32>
    %53 = tpu.matmul %51, %52, %cst_51 {dimension_numbers = #tpu.dot_dimension_numbers<[1], [0], [0], [1], [0, 0, 1, 1], [], []>} : vector<8x360xbf16>, vector<360x128xbf16>, vector<8x128xf32> -> vector<8x128xf32>
    %c0_52 = arith.constant 0 : index
    %c0_53 = arith.constant 0 : index
    %54 = vector.load %arg7[%c0_52, %c0_53] : memref<1x128xf32, #tpu.memory_space<vmem>>, vector<1x128xf32>
    %55 = vector.broadcast %54 : vector<1x128xf32> to vector<8x128xf32>
    %56 = arith.addf %53, %55 : vector<8x128xf32>
    %57 = arith.negf %56 : vector<8x128xf32>
    %58 = math.exp %57 : vector<8x128xf32>
    %cst_54 = arith.constant 1.000000e+00 : f32
    %59 = vector.broadcast %cst_54 : f32 to vector<8x128xf32>
    %60 = arith.addf %59, %58 : vector<8x128xf32>
    %61 = arith.divf %59, %60 : vector<8x128xf32>
    %62 = arith.truncf %61 : vector<8x128xf32> to vector<8x128xbf16>
    %c0_55 = arith.constant 0 : index
    %c0_56 = arith.constant 0 : index
    %63 = vector.load %arg8[%c0_55, %c0_56] : memref<128x64xbf16, #tpu.memory_space<vmem>>, vector<128x64xbf16>
    %cst_57 = arith.constant dense<0.000000e+00> : vector<8x64xf32>
    %64 = tpu.matmul %62, %63, %cst_57 {dimension_numbers = #tpu.dot_dimension_numbers<[1], [0], [0], [1], [0, 0, 1, 1], [], []>} : vector<8x128xbf16>, vector<128x64xbf16>, vector<8x64xf32> -> vector<8x64xf32>
    %c0_58 = arith.constant 0 : index
    %c0_59 = arith.constant 0 : index
    %65 = vector.load %arg9[%c0_58, %c0_59] : memref<128x64xbf16, #tpu.memory_space<vmem>>, vector<128x64xbf16>
    %cst_60 = arith.constant dense<0.000000e+00> : vector<8x64xf32>
    %66 = tpu.matmul %62, %65, %cst_60 {dimension_numbers = #tpu.dot_dimension_numbers<[1], [0], [0], [1], [0, 0, 1, 1], [], []>} : vector<8x128xbf16>, vector<128x64xbf16>, vector<8x64xf32> -> vector<8x64xf32>
    %67 = arith.maximumf %64, %66 : vector<8x64xf32>
    %68 = vector.shape_cast %67 : vector<8x64xf32> to vector<1x8x64xf32>
    %c0_61 = arith.constant 0 : index
    %c0_62 = arith.constant 0 : index
    %c0_63 = arith.constant 0 : index
    %69 = vector.load %arg18[%c0_61, %c0_62, %c0_63] : memref<1x8x64xf32, #tpu.memory_space<vmem>>, vector<1x8x64xf32>
    tpu.vector_store %arg18[%c0_61, %c0_62, %c0_63], %68 {strides = array<i32>} : memref<1x8x64xf32, #tpu.memory_space<vmem>>, vector<1x8x64xf32>,
    %c0_64 = arith.constant 0 : index
    %c0_65 = arith.constant 0 : index
    %c0_66 = arith.constant 0 : index
    %70 = vector.load %arg18[%c0_64, %c0_65, %c0_66] : memref<1x8x64xf32, #tpu.memory_space<vmem>>, vector<1x1x64xf32>
    %71 = vector.shape_cast %70 : vector<1x1x64xf32> to vector<1x64xf32>
    %c0_67 = arith.constant 0 : index
    %c1_68 = arith.constant 1 : index
    %c0_69 = arith.constant 0 : index
    %72 = vector.load %arg18[%c0_67, %c1_68, %c0_69] : memref<1x8x64xf32, #tpu.memory_space<vmem>>, vector<1x1x64xf32>
    %73 = vector.shape_cast %72 : vector<1x1x64xf32> to vector<1x64xf32>
    %74 = arith.maximumf %71, %73 : vector<1x64xf32>
    %c0_70 = arith.constant 0 : index
    %c2_71 = arith.constant 2 : index
    %c0_72 = arith.constant 0 : index
    %75 = vector.load %arg18[%c0_70, %c2_71, %c0_72] : memref<1x8x64xf32, #tpu.memory_space<vmem>>, vector<1x1x64xf32>
    %76 = vector.shape_cast %75 : vector<1x1x64xf32> to vector<1x64xf32>
    %c0_73 = arith.constant 0 : index
    %c3_74 = arith.constant 3 : index
    %c0_75 = arith.constant 0 : index
    %77 = vector.load %arg18[%c0_73, %c3_74, %c0_75] : memref<1x8x64xf32, #tpu.memory_space<vmem>>, vector<1x1x64xf32>
    %78 = vector.shape_cast %77 : vector<1x1x64xf32> to vector<1x64xf32>
    %79 = arith.maximumf %76, %78 : vector<1x64xf32>
    %c0_76 = arith.constant 0 : index
    %c4_77 = arith.constant 4 : index
    %c0_78 = arith.constant 0 : index
    %80 = vector.load %arg18[%c0_76, %c4_77, %c0_78] : memref<1x8x64xf32, #tpu.memory_space<vmem>>, vector<1x1x64xf32>
    %81 = vector.shape_cast %80 : vector<1x1x64xf32> to vector<1x64xf32>
    %c0_79 = arith.constant 0 : index
    %c5_80 = arith.constant 5 : index
    %c0_81 = arith.constant 0 : index
    %82 = vector.load %arg18[%c0_79, %c5_80, %c0_81] : memref<1x8x64xf32, #tpu.memory_space<vmem>>, vector<1x1x64xf32>
    %83 = vector.shape_cast %82 : vector<1x1x64xf32> to vector<1x64xf32>
    %84 = arith.maximumf %81, %83 : vector<1x64xf32>
    %c0_82 = arith.constant 0 : index
    %c6_83 = arith.constant 6 : index
    %c0_84 = arith.constant 0 : index
    %85 = vector.load %arg18[%c0_82, %c6_83, %c0_84] : memref<1x8x64xf32, #tpu.memory_space<vmem>>, vector<1x1x64xf32>
    %86 = vector.shape_cast %85 : vector<1x1x64xf32> to vector<1x64xf32>
    %c0_85 = arith.constant 0 : index
    %c7_86 = arith.constant 7 : index
    %c0_87 = arith.constant 0 : index
    %87 = vector.load %arg18[%c0_85, %c7_86, %c0_87] : memref<1x8x64xf32, #tpu.memory_space<vmem>>, vector<1x1x64xf32>
    %88 = vector.shape_cast %87 : vector<1x1x64xf32> to vector<1x64xf32>
    %89 = arith.maximumf %86, %88 : vector<1x64xf32>
    %90 = tpu.concatenate %74, %79, %84, %89 in 1 : vector<1x64xf32>, vector<1x64xf32>, vector<1x64xf32>, vector<1x64xf32> -> vector<1x256xf32>
    %91 = arith.truncf %90 : vector<1x256xf32> to vector<1x256xbf16>
    %c0_88 = arith.constant 0 : index
    %c0_89 = arith.constant 0 : index
    %92 = vector.load %arg10[%c0_88, %c0_89] : memref<256x120xbf16, #tpu.memory_space<vmem>>, vector<256x120xbf16>
    %cst_90 = arith.constant dense<0.000000e+00> : vector<1x120xf32>
    %93 = tpu.matmul %91, %92, %cst_90 {dimension_numbers = #tpu.dot_dimension_numbers<[1], [0], [0], [1], [0, 0, 1, 1], [], []>} : vector<1x256xbf16>, vector<256x120xbf16>, vector<1x120xf32> -> vector<1x120xf32>
    %c0_91 = arith.constant 0 : index
    %c0_92 = arith.constant 0 : index
    %94 = vector.load %arg11[%c0_91, %c0_92] : memref<1x120xf32, #tpu.memory_space<vmem>>, vector<1x120xf32>
    %95 = arith.addf %93, %94 : vector<1x120xf32>
    %96 = arith.negf %95 : vector<1x120xf32>
    %97 = math.exp %96 : vector<1x120xf32>
    %cst_93 = arith.constant 1.000000e+00 : f32
    %98 = vector.broadcast %cst_93 : f32 to vector<1x120xf32>
    %99 = arith.addf %98, %97 : vector<1x120xf32>
    %100 = arith.divf %98, %99 : vector<1x120xf32>
    %101 = arith.truncf %100 : vector<1x120xf32> to vector<1x120xbf16>
    %c0_94 = arith.constant 0 : index
    %c0_95 = arith.constant 0 : index
    %102 = vector.load %arg12[%c0_94, %c0_95] : memref<120x84xbf16, #tpu.memory_space<vmem>>, vector<120x84xbf16>
    %cst_96 = arith.constant dense<0.000000e+00> : vector<1x84xf32>
    %103 = tpu.matmul %101, %102, %cst_96 {dimension_numbers = #tpu.dot_dimension_numbers<[1], [0], [0], [1], [0, 0, 1, 1], [], []>} : vector<1x120xbf16>, vector<120x84xbf16>, vector<1x84xf32> -> vector<1x84xf32>
    %c0_97 = arith.constant 0 : index
    %c0_98 = arith.constant 0 : index
    %104 = vector.load %arg13[%c0_97, %c0_98] : memref<1x84xf32, #tpu.memory_space<vmem>>, vector<1x84xf32>
    %105 = arith.addf %103, %104 : vector<1x84xf32>
    %106 = arith.negf %105 : vector<1x84xf32>
    %107 = math.exp %106 : vector<1x84xf32>
    %cst_99 = arith.constant 1.000000e+00 : f32
    %108 = vector.broadcast %cst_99 : f32 to vector<1x84xf32>
    %109 = arith.addf %108, %107 : vector<1x84xf32>
    %110 = arith.divf %108, %109 : vector<1x84xf32>
    %111 = arith.truncf %110 : vector<1x84xf32> to vector<1x84xbf16>
    %c0_100 = arith.constant 0 : index
    %c0_101 = arith.constant 0 : index
    %112 = vector.load %arg14[%c0_100, %c0_101] : memref<84x10xbf16, #tpu.memory_space<vmem>>, vector<84x10xbf16>
    %cst_102 = arith.constant dense<0.000000e+00> : vector<1x10xf32>
    %113 = tpu.matmul %111, %112, %cst_102 {dimension_numbers = #tpu.dot_dimension_numbers<[1], [0], [0], [1], [0, 0, 1, 1], [], []>} : vector<1x84xbf16>, vector<84x10xbf16>, vector<1x10xf32> -> vector<1x10xf32>
    %c0_103 = arith.constant 0 : index
    %c0_104 = arith.constant 0 : index
    %114 = vector.load %arg15[%c0_103, %c0_104] : memref<1x10xf32, #tpu.memory_space<vmem>>, vector<1x10xf32>
    %115 = arith.addf %113, %114 : vector<1x10xf32>
    %116 = vector.shape_cast %115 : vector<1x10xf32> to vector<1x1x10xf32>
    %c0_105 = arith.constant 0 : index
    %c0_106 = arith.constant 0 : index
    %c0_107 = arith.constant 0 : index
    %117 = vector.load %arg16[%c0_105, %c0_106, %c0_107] : memref<1x1x10xf32, #tpu.memory_space<vmem>>, vector<1x1x10xf32>
    tpu.vector_store %arg16[%c0_105, %c0_106, %c0_107], %116 {strides = array<i32>} : memref<1x1x10xf32, #tpu.memory_space<vmem>>, vector<1x1x10xf32>,
    return
  }
  func.func @transform_0(%arg0: i32) -> (i32, i32, i32) {
    %c0_i32 = arith.constant 0 : i32
    %c0_i32_0 = arith.constant 0 : i32
    %c0_i32_1 = arith.constant 0 : i32
    return %arg0, %c0_i32, %c0_i32_0 : i32, i32, i32
  }
  func.func @transform_1(%arg0: i32) -> (i32, i32) {
    %c0_i32 = arith.constant 0 : i32
    %c0_i32_0 = arith.constant 0 : i32
    %c0_i32_1 = arith.constant 0 : i32
    return %c0_i32, %c0_i32_0 : i32, i32
  }
  func.func @transform_2(%arg0: i32) -> (i32, i32) {
    %c0_i32 = arith.constant 0 : i32
    %c0_i32_0 = arith.constant 0 : i32
    %c0_i32_1 = arith.constant 0 : i32
    return %c0_i32, %c0_i32_0 : i32, i32
  }
  func.func @transform_3(%arg0: i32) -> (i32, i32) {
    %c0_i32 = arith.constant 0 : i32
    %c0_i32_0 = arith.constant 0 : i32
    %c0_i32_1 = arith.constant 0 : i32
    return %c0_i32, %c0_i32_0 : i32, i32
  }
  func.func @transform_4(%arg0: i32) -> (i32, i32) {
    %c0_i32 = arith.constant 0 : i32
    %c0_i32_0 = arith.constant 0 : i32
    %c0_i32_1 = arith.constant 0 : i32
    return %c0_i32, %c0_i32_0 : i32, i32
  }
  func.func @transform_5(%arg0: i32) -> (i32, i32) {
    %c0_i32 = arith.constant 0 : i32
    %c0_i32_0 = arith.constant 0 : i32
    %c0_i32_1 = arith.constant 0 : i32
    return %c0_i32, %c0_i32_0 : i32, i32
  }
  func.func @transform_6(%arg0: i32) -> (i32, i32) {
    %c0_i32 = arith.constant 0 : i32
    %c0_i32_0 = arith.constant 0 : i32
    %c0_i32_1 = arith.constant 0 : i32
    return %c0_i32, %c0_i32_0 : i32, i32
  }
  func.func @transform_7(%arg0: i32) -> (i32, i32) {
    %c0_i32 = arith.constant 0 : i32
    %c0_i32_0 = arith.constant 0 : i32
    %c0_i32_1 = arith.constant 0 : i32
    return %c0_i32, %c0_i32_0 : i32, i32
  }
  func.func @transform_8(%arg0: i32) -> (i32, i32) {
    %c0_i32 = arith.constant 0 : i32
    %c0_i32_0 = arith.constant 0 : i32
    %c0_i32_1 = arith.constant 0 : i32
    return %c0_i32, %c0_i32_0 : i32, i32
  }
  func.func @transform_9(%arg0: i32) -> (i32, i32) {
    %c0_i32 = arith.constant 0 : i32
    %c0_i32_0 = arith.constant 0 : i32
    %c0_i32_1 = arith.constant 0 : i32
    return %c0_i32, %c0_i32_0 : i32, i32
  }
  func.func @transform_10(%arg0: i32) -> (i32, i32) {
    %c0_i32 = arith.constant 0 : i32
    %c0_i32_0 = arith.constant 0 : i32
    %c0_i32_1 = arith.constant 0 : i32
    return %c0_i32, %c0_i32_0 : i32, i32
  }
  func.func @transform_11(%arg0: i32) -> (i32, i32) {
    %c0_i32 = arith.constant 0 : i32
    %c0_i32_0 = arith.constant 0 : i32
    %c0_i32_1 = arith.constant 0 : i32
    return %c0_i32, %c0_i32_0 : i32, i32
  }
  func.func @transform_12(%arg0: i32) -> (i32, i32) {
    %c0_i32 = arith.constant 0 : i32
    %c0_i32_0 = arith.constant 0 : i32
    %c0_i32_1 = arith.constant 0 : i32
    return %c0_i32, %c0_i32_0 : i32, i32
  }
  func.func @transform_13(%arg0: i32) -> (i32, i32) {
    %c0_i32 = arith.constant 0 : i32
    %c0_i32_0 = arith.constant 0 : i32
    %c0_i32_1 = arith.constant 0 : i32
    return %c0_i32, %c0_i32_0 : i32, i32
  }
  func.func @transform_14(%arg0: i32) -> (i32, i32) {
    %c0_i32 = arith.constant 0 : i32
    %c0_i32_0 = arith.constant 0 : i32
    %c0_i32_1 = arith.constant 0 : i32
    return %c0_i32, %c0_i32_0 : i32, i32
  }
  func.func @transform_15(%arg0: i32) -> (i32, i32, i32) {
    %c0_i32 = arith.constant 0 : i32
    %c0_i32_0 = arith.constant 0 : i32
    %c0_i32_1 = arith.constant 0 : i32
    return %arg0, %c0_i32, %c0_i32_0 : i32, i32, i32
  }
}

</mosaic_0001>

<llo_original>
// kernel: lenet_forward.1
$region0: #{lenet_forward.1}
  #allocation0 [shape = 'u32[]', space=smem, size = 0x4, offset = 0x4, fixed_abs, tag = 'smem constant byte address 0x4 - core index']
  #allocation1 [shape = 'u32[144,128]{1,0:T(1,128)}', space=vmem, size = 0x12000, scoped, tag = 'internal scratch']
  #allocation2 [shape = 'f32[1,24,72]{2,1,0:T(8,128)}', space=vmem, size = 0x3000, scoped, tag = 'scratch operand']
  #allocation3 [shape = 'f32[1,8,64]{2,1,0:T(8,128)}', space=vmem, size = 0x1000, scoped, tag = 'scratch operand']
  %s0 = inlined_call_operand.vmem [shape: f32[2,28,28], index: 0, kind: input, shape index: {}]
  %s1 = inlined_call_operand.vmem [shape: bf16[140,144], index: 1, kind: input, shape index: {}]
  %s2 = inlined_call_operand.vmem [shape: f32[1,144], index: 2, kind: input, shape index: {}]
  %s3 = inlined_call_operand.vmem [shape: bf16[144,72], index: 3, kind: input, shape index: {}]
  %s4 = inlined_call_operand.vmem [shape: bf16[144,72], index: 4, kind: input, shape index: {}]
  %s5 = inlined_call_operand.vmem [shape: bf16[360,128], index: 5, kind: input, shape index: {}]
  %s6 = inlined_call_operand.vmem [shape: f32[1,128], index: 6, kind: input, shape index: {}]
  %s7 = inlined_call_operand.vmem [shape: bf16[128,64], index: 7, kind: input, shape index: {}]
  %s8 = inlined_call_operand.vmem [shape: bf16[128,64], index: 8, kind: input, shape index: {}]
  %s9 = inlined_call_operand.vmem [shape: bf16[256,120], index: 9, kind: input, shape index: {}]
  %s10 = inlined_call_operand.vmem [shape: f32[1,120], index: 10, kind: input, shape index: {}]
  %s11 = inlined_call_operand.vmem [shape: bf16[120,84], index: 11, kind: input, shape index: {}]
  %s12 = inlined_call_operand.vmem [shape: f32[1,84], index: 12, kind: input, shape index: {}]
  %s13 = inlined_call_operand.vmem [shape: bf16[84,10], index: 13, kind: input, shape index: {}]
  %s14 = inlined_call_operand.vmem [shape: f32[1,10], index: 14, kind: input, shape index: {}]
  %s15 = inlined_call_operand.hbm [shape: f32[2,1,10], index: 15, kind: output, shape index: {}]
  %s16 = sld [smem:[#allocation0]]
  $region93: #{lenet_forward.1} parent=0
    _
  %s18 = ssub.s32 1, %s16
  %s19 = scalar_select 0, %s18, %s16
  $region1: #{lenet_forward.1} parent=0
    #allocation4 [shape = 'u8[1024]{0}', space=vmem, size = 0x400, scoped, tag = 'output window, operand 0']
    #allocation5 [shape = 's32[2]{0}', space=sflag, size = 0x8, scoped, tag = 'scoped memory for lenet_forward.1']
    %20 = vsyncpa [#allocation5], 0
    %s21 = scalar_lea.sflag [#allocation5], 1
    %22 = vsyncpa %s21, 0
    loop: start=0, step=1, limit=4
    $region2: #{lenet_forward.1} parent=1 // loop_pre_header
      _
    $region3: #{lenet_forward.1} parent=1 // loop_header
      %s24 = sphi 0, %s28
      %p25 = scmp.ge.s32.totalorder %s24, 4
      %s34 = sphi 0, %s36
      %s37 = sphi 0, %s34
      %s38 = sphi 0, %s37
      %s54 = sphi 0, %s38
      %s58 = sphi 0, %s58
      %s60 = sphi 0, %s58
      %s61 = sphi 0, %s60
      %s75 = sphi 0, %s61
      %s79 = sphi 0, %s79
      %s81 = sphi 0, %s79
      %s82 = sphi 0, %s81
      %s96 = sphi 0, %s82
      %s100 = sphi 0, %s100
      %s102 = sphi 0, %s100
      %s103 = sphi 0, %s102
      %s117 = sphi 0, %s103
      %s121 = sphi 0, %s121
      %s123 = sphi 0, %s121
      %s124 = sphi 0, %s123
      %s138 = sphi 0, %s124
      %s142 = sphi 0, %s142
      %s144 = sphi 0, %s142
      %s145 = sphi 0, %s144
      %s159 = sphi 0, %s145
      %s163 = sphi 0, %s163
      %s165 = sphi 0, %s163
      %s166 = sphi 0, %s165
      %s180 = sphi 0, %s166
      %s184 = sphi 0, %s184
      %s186 = sphi 0, %s184
      %s187 = sphi 0, %s186
      %s201 = sphi 0, %s187
      %s205 = sphi 0, %s205
      %s207 = sphi 0, %s205
      %s208 = sphi 0, %s207
      %s222 = sphi 0, %s208
      %s226 = sphi 0, %s226
      %s228 = sphi 0, %s226
      %s229 = sphi 0, %s228
      %s243 = sphi 0, %s229
      %s247 = sphi 0, %s247
      %s249 = sphi 0, %s247
      %s250 = sphi 0, %s249
      %s264 = sphi 0, %s250
      %s268 = sphi 0, %s268
      %s270 = sphi 0, %s268
      %s271 = sphi 0, %s270
      %s285 = sphi 0, %s271
      %s289 = sphi 0, %s289
      %s291 = sphi 0, %s289
      %s292 = sphi 0, %s291
      %s306 = sphi 0, %s292
      %s310 = sphi 0, %s310
      %s312 = sphi 0, %s310
      %s313 = sphi 0, %s312
      %s327 = sphi 0, %s313
      %s331 = sphi 0, %s331
      %s333 = sphi 0, %s331
      %s334 = sphi 0, %s333
      %s348 = sphi 0, %s334
      %s354 = sphi 0, %s356
      %s357 = sphi 0, %s354
      %s358 = sphi 0, %s357
      %s374 = sphi 0, %s358
    $region4: #{lenet_forward.1} parent=1 // loop_header_branch
      %27 = sbr.rel (%p25) target = $region8
    $region5: #{lenet_forward.1} parent=1 // loop_body
      %s29 = ssub.s32 %s24, 1
      %s30 = ssub.s32 %s24, 2
      %s31 = sadd.s32 %s24, 1
      %s32 = ssub.s32 %s24, %s31
      %p33 = scmp.eq.s32.totalorder %s32, 0
      %s35 = sadd.s32 %s34, 1
      %s36 = scalar_select %p33, %s34, %s35
      %p39 = pneg %p33
      %p40 = scmp.eq.s32.totalorder %s24, 1
      %p41 = por %p39, %p40
      %p42 = scmp.ne.s32.totalorder %s34, %s37
      %p43 = scmp.eq.s32.totalorder %s24, 0
      %p44 = por %p42, %p43
      %p45 = scmp.ne.s32.totalorder %s34, %s37
      %p46 = scmp.eq.s32.totalorder %s29, 1
      %p47 = por %p45, %p46
      %p48 = scmp.ne.s32.totalorder %s37, %s38
      %p49 = scmp.eq.s32.totalorder %s29, 0
      %p50 = por %p48, %p49
      %p51 = scmp.ne.s32.totalorder %s37, %s38
      %p52 = scmp.eq.s32.totalorder %s30, 1
      %p53 = por %p51, %p52
      %p55 = scmp.ne.s32.totalorder %s38, %s54
      %p56 = scmp.eq.s32.totalorder %s30, 0
      %p57 = por %p55, %p56
      %s59 = sadd.s32 %s58, 1
      %p62 = scmp.eq.s32.totalorder %s24, 1
      %p63 = scmp.ne.s32.totalorder %s58, %s60
      %p64 = scmp.eq.s32.totalorder %s24, 0
      %p65 = por %p63, %p64
      %p66 = scmp.ne.s32.totalorder %s58, %s60
      %p67 = scmp.eq.s32.totalorder %s29, 1
      %p68 = por %p66, %p67
      %p69 = scmp.ne.s32.totalorder %s60, %s61
      %p70 = scmp.eq.s32.totalorder %s29, 0
      %p71 = por %p69, %p70
      %p72 = scmp.ne.s32.totalorder %s60, %s61
      %p73 = scmp.eq.s32.totalorder %s30, 1
      %p74 = por %p72, %p73
      %p76 = scmp.ne.s32.totalorder %s61, %s75
      %p77 = scmp.eq.s32.totalorder %s30, 0
      %p78 = por %p76, %p77
      %s80 = sadd.s32 %s79, 1
      %p83 = scmp.eq.s32.totalorder %s24, 1
      %p84 = scmp.ne.s32.totalorder %s79, %s81
      %p85 = scmp.eq.s32.totalorder %s24, 0
      %p86 = por %p84, %p85
      %p87 = scmp.ne.s32.totalorder %s79, %s81
      %p88 = scmp.eq.s32.totalorder %s29, 1
      %p89 = por %p87, %p88
      %p90 = scmp.ne.s32.totalorder %s81, %s82
      %p91 = scmp.eq.s32.totalorder %s29, 0
      %p92 = por %p90, %p91
      %p93 = scmp.ne.s32.totalorder %s81, %s82
      %p94 = scmp.eq.s32.totalorder %s30, 1
      %p95 = por %p93, %p94
      %p97 = scmp.ne.s32.totalorder %s82, %s96
      %p98 = scmp.eq.s32.totalorder %s30, 0
      %p99 = por %p97, %p98
      %s101 = sadd.s32 %s100, 1
      %p104 = scmp.eq.s32.totalorder %s24, 1
      %p105 = scmp.ne.s32.totalorder %s100, %s102
      %p106 = scmp.eq.s32.totalorder %s24, 0
      %p107 = por %p105, %p106
      %p108 = scmp.ne.s32.totalorder %s100, %s102
      %p109 = scmp.eq.s32.totalorder %s29, 1
      %p110 = por %p108, %p109
      %p111 = scmp.ne.s32.totalorder %s102, %s103
      %p112 = scmp.eq.s32.totalorder %s29, 0
      %p113 = por %p111, %p112
      %p114 = scmp.ne.s32.totalorder %s102, %s103
      %p115 = scmp.eq.s32.totalorder %s30, 1
      %p116 = por %p114, %p115
      %p118 = scmp.ne.s32.totalorder %s103, %s117
      %p119 = scmp.eq.s32.totalorder %s30, 0
      %p120 = por %p118, %p119
      %s122 = sadd.s32 %s121, 1
      %p125 = scmp.eq.s32.totalorder %s24, 1
      %p126 = scmp.ne.s32.totalorder %s121, %s123
      %p127 = scmp.eq.s32.totalorder %s24, 0
      %p128 = por %p126, %p127
      %p129 = scmp.ne.s32.totalorder %s121, %s123
      %p130 = scmp.eq.s32.totalorder %s29, 1
      %p131 = por %p129, %p130
      %p132 = scmp.ne.s32.totalorder %s123, %s124
      %p133 = scmp.eq.s32.totalorder %s29, 0
      %p134 = por %p132, %p133
      %p135 = scmp.ne.s32.totalorder %s123, %s124
      %p136 = scmp.eq.s32.totalorder %s30, 1
      %p137 = por %p135, %p136
      %p139 = scmp.ne.s32.totalorder %s124, %s138
      %p140 = scmp.eq.s32.totalorder %s30, 0
      %p141 = por %p139, %p140
      %s143 = sadd.s32 %s142, 1
      %p146 = scmp.eq.s32.totalorder %s24, 1
      %p147 = scmp.ne.s32.totalorder %s142, %s144
      %p148 = scmp.eq.s32.totalorder %s24, 0
      %p149 = por %p147, %p148
      %p150 = scmp.ne.s32.totalorder %s142, %s144
      %p151 = scmp.eq.s32.totalorder %s29, 1
      %p152 = por %p150, %p151
      %p153 = scmp.ne.s32.totalorder %s144, %s145
      %p154 = scmp.eq.s32.totalorder %s29, 0
      %p155 = por %p153, %p154
      %p156 = scmp.ne.s32.totalorder %s144, %s145
      %p157 = scmp.eq.s32.totalorder %s30, 1
      %p158 = por %p156, %p157
      %p160 = scmp.ne.s32.totalorder %s145, %s159
      %p161 = scmp.eq.s32.totalorder %s30, 0
      %p162 = por %p160, %p161
      %s164 = sadd.s32 %s163, 1
      %p167 = scmp.eq.s32.totalorder %s24, 1
      %p168 = scmp.ne.s32.totalorder %s163, %s165
      %p169 = scmp.eq.s32.totalorder %s24, 0
      %p170 = por %p168, %p169
      %p171 = scmp.ne.s32.totalorder %s163, %s165
      %p172 = scmp.eq.s32.totalorder %s29, 1
      %p173 = por %p171, %p172
      %p174 = scmp.ne.s32.totalorder %s165, %s166
      %p175 = scmp.eq.s32.totalorder %s29, 0
      %p176 = por %p174, %p175
      %p177 = scmp.ne.s32.totalorder %s165, %s166
      %p178 = scmp.eq.s32.totalorder %s30, 1
      %p179 = por %p177, %p178
      %p181 = scmp.ne.s32.totalorder %s166, %s180
      %p182 = scmp.eq.s32.totalorder %s30, 0
      %p183 = por %p181, %p182
      %s185 = sadd.s32 %s184, 1
      %p188 = scmp.eq.s32.totalorder %s24, 1
      %p189 = scmp.ne.s32.totalorder %s184, %s186
      %p190 = scmp.eq.s32.totalorder %s24, 0
      %p191 = por %p189, %p190
      %p192 = scmp.ne.s32.totalorder %s184, %s186
      %p193 = scmp.eq.s32.totalorder %s29, 1
      %p194 = por %p192, %p193
      %p195 = scmp.ne.s32.totalorder %s186, %s187
      %p196 = scmp.eq.s32.totalorder %s29, 0
      %p197 = por %p195, %p196
      %p198 = scmp.ne.s32.totalorder %s186, %s187
      %p199 = scmp.eq.s32.totalorder %s30, 1
      %p200 = por %p198, %p199
      %p202 = scmp.ne.s32.totalorder %s187, %s201
      %p203 = scmp.eq.s32.totalorder %s30, 0
      %p204 = por %p202, %p203
      %s206 = sadd.s32 %s205, 1
      %p209 = scmp.eq.s32.totalorder %s24, 1
      %p210 = scmp.ne.s32.totalorder %s205, %s207
      %p211 = scmp.eq.s32.totalorder %s24, 0
      %p212 = por %p210, %p211
      %p213 = scmp.ne.s32.totalorder %s205, %s207
      %p214 = scmp.eq.s32.totalorder %s29, 1
      %p215 = por %p213, %p214
      %p216 = scmp.ne.s32.totalorder %s207, %s208
      %p217 = scmp.eq.s32.totalorder %s29, 0
      %p218 = por %p216, %p217
      %p219 = scmp.ne.s32.totalorder %s207, %s208
      %p220 = scmp.eq.s32.totalorder %s30, 1
      %p221 = por %p219, %p220
      %p223 = scmp.ne.s32.totalorder %s208, %s222
      %p224 = scmp.eq.s32.totalorder %s30, 0
      %p225 = por %p223, %p224
      %s227 = sadd.s32 %s226, 1
      %p230 = scmp.eq.s32.totalorder %s24, 1
      %p231 = scmp.ne.s32.totalorder %s226, %s228
      %p232 = scmp.eq.s32.totalorder %s24, 0
      %p233 = por %p231, %p232
      %p234 = scmp.ne.s32.totalorder %s226, %s228
      %p235 = scmp.eq.s32.totalorder %s29, 1
      %p236 = por %p234, %p235
      %p237 = scmp.ne.s32.totalorder %s228, %s229
      %p238 = scmp.eq.s32.totalorder %s29, 0
      %p239 = por %p237, %p238
      %p240 = scmp.ne.s32.totalorder %s228, %s229
      %p241 = scmp.eq.s32.totalorder %s30, 1
      %p242 = por %p240, %p241
      %p244 = scmp.ne.s32.totalorder %s229, %s243
      %p245 = scmp.eq.s32.totalorder %s30, 0
      %p246 = por %p244, %p245
      %s248 = sadd.s32 %s247, 1
      %p251 = scmp.eq.s32.totalorder %s24, 1
      %p252 = scmp.ne.s32.totalorder %s247, %s249
      %p253 = scmp.eq.s32.totalorder %s24, 0
      %p254 = por %p252, %p253
      %p255 = scmp.ne.s32.totalorder %s247, %s249
      %p256 = scmp.eq.s32.totalorder %s29, 1
      %p257 = por %p255, %p256
      %p258 = scmp.ne.s32.totalorder %s249, %s250
      %p259 = scmp.eq.s32.totalorder %s29, 0
      %p260 = por %p258, %p259
      %p261 = scmp.ne.s32.totalorder %s249, %s250
      %p262 = scmp.eq.s32.totalorder %s30, 1
      %p263 = por %p261, %p262
      %p265 = scmp.ne.s32.totalorder %s250, %s264
      %p266 = scmp.eq.s32.totalorder %s30, 0
      %p267 = por %p265, %p266
      %s269 = sadd.s32 %s268, 1
      %p272 = scmp.eq.s32.totalorder %s24, 1
      %p273 = scmp.ne.s32.totalorder %s268, %s270
      %p274 = scmp.eq.s32.totalorder %s24, 0
      %p275 = por %p273, %p274
      %p276 = scmp.ne.s32.totalorder %s268, %s270
      %p277 = scmp.eq.s32.totalorder %s29, 1
      %p278 = por %p276, %p277
      %p279 = scmp.ne.s32.totalorder %s270, %s271
      %p280 = scmp.eq.s32.totalorder %s29, 0
      %p281 = por %p279, %p280
      %p282 = scmp.ne.s32.totalorder %s270, %s271
      %p283 = scmp.eq.s32.totalorder %s30, 1
      %p284 = por %p282, %p283
      %p286 = scmp.ne.s32.totalorder %s271, %s285
      %p287 = scmp.eq.s32.totalorder %s30, 0
      %p288 = por %p286, %p287
      %s290 = sadd.s32 %s289, 1
      %p293 = scmp.eq.s32.totalorder %s24, 1
      %p294 = scmp.ne.s32.totalorder %s289, %s291
      %p295 = scmp.eq.s32.totalorder %s24, 0
      %p296 = por %p294, %p295
      %p297 = scmp.ne.s32.totalorder %s289, %s291
      %p298 = scmp.eq.s32.totalorder %s29, 1
      %p299 = por %p297, %p298
      %p300 = scmp.ne.s32.totalorder %s291, %s292
      %p301 = scmp.eq.s32.totalorder %s29, 0
      %p302 = por %p300, %p301
      %p303 = scmp.ne.s32.totalorder %s291, %s292
      %p304 = scmp.eq.s32.totalorder %s30, 1
      %p305 = por %p303, %p304
      %p307 = scmp.ne.s32.totalorder %s292, %s306
      %p308 = scmp.eq.s32.totalorder %s30, 0
      %p309 = por %p307, %p308
      %s311 = sadd.s32 %s310, 1
      %p314 = scmp.eq.s32.totalorder %s24, 1
      %p315 = scmp.ne.s32.totalorder %s310, %s312
      %p316 = scmp.eq.s32.totalorder %s24, 0
      %p317 = por %p315, %p316
      %p318 = scmp.ne.s32.totalorder %s310, %s312
      %p319 = scmp.eq.s32.totalorder %s29, 1
      %p320 = por %p318, %p319
      %p321 = scmp.ne.s32.totalorder %s312, %s313
      %p322 = scmp.eq.s32.totalorder %s29, 0
      %p323 = por %p321, %p322
      %p324 = scmp.ne.s32.totalorder %s312, %s313
      %p325 = scmp.eq.s32.totalorder %s30, 1
      %p326 = por %p324, %p325
      %p328 = scmp.ne.s32.totalorder %s313, %s327
      %p329 = scmp.eq.s32.totalorder %s30, 0
      %p330 = por %p328, %p329
      %s332 = sadd.s32 %s331, 1
      %p335 = scmp.eq.s32.totalorder %s24, 1
      %p336 = scmp.ne.s32.totalorder %s331, %s333
      %p337 = scmp.eq.s32.totalorder %s24, 0
      %p338 = por %p336, %p337
      %p339 = scmp.ne.s32.totalorder %s331, %s333
      %p340 = scmp.eq.s32.totalorder %s29, 1
      %p341 = por %p339, %p340
      %p342 = scmp.ne.s32.totalorder %s333, %s334
      %p343 = scmp.eq.s32.totalorder %s29, 0
      %p344 = por %p342, %p343
      %p345 = scmp.ne.s32.totalorder %s333, %s334
      %p346 = scmp.eq.s32.totalorder %s30, 1
      %p347 = por %p345, %p346
      %p349 = scmp.ne.s32.totalorder %s334, %s348
      %p350 = scmp.eq.s32.totalorder %s30, 0
      %p351 = por %p349, %p350
      %s352 = ssub.s32 %s24, %s31
      %p353 = scmp.eq.s32.totalorder %s352, 0
      %s355 = sadd.s32 %s354, 1
      %s356 = scalar_select %p353, %s354, %s355
      %p359 = pneg %p353
      %p360 = scmp.eq.s32.totalorder %s24, 1
      %p361 = por %p359, %p360
      %p362 = scmp.ne.s32.totalorder %s354, %s357
      %p363 = scmp.eq.s32.totalorder %s24, 0
      %p364 = por %p362, %p363
      %p365 = scmp.ne.s32.totalorder %s354, %s357
      %p366 = scmp.eq.s32.totalorder %s29, 1
      %p367 = por %p365, %p366
      %p368 = scmp.ne.s32.totalorder %s357, %s358
      %p369 = scmp.eq.s32.totalorder %s29, 0
      %p370 = por %p368, %p369
      %p371 = scmp.ne.s32.totalorder %s357, %s358
      %p372 = scmp.eq.s32.totalorder %s30, 1
      %p373 = por %p371, %p372
      %p375 = scmp.ne.s32.totalorder %s358, %s374
      %p376 = scmp.eq.s32.totalorder %s30, 0
      %p377 = por %p375, %p376
      %p378 = scmp.le.s32.totalorder 1, %s24
      %p379 = scmp.lt.s32.totalorder %s24, 3
      %p380 = pnand %p378, %p379
      %p381 = pneg %p380
      // Predicated region
      $region9: #{lenet_forward.1} parent=5 // pred_check
        _
      $region10: #{lenet_forward.1} parent=5 // pred_check_branch
        %383 = sbr.rel (%p380) target = $region12
      $region11: #{lenet_forward.1} parent=5 // pred_region
        %s384 = ssub.s32 %s24, 1
        // Predicated region
        $region13: #{lenet_forward.1} parent=11 // pred_check
          %p385 = pneg %p71
        $region14: #{lenet_forward.1} parent=11 // pred_check_branch
          %387 = sbr.rel (%p385) target = $region16
        $region15: #{lenet_forward.1} parent=11 // pred_region
          _
        $region16: #{lenet_forward.1} parent=11 // pred_fallthru
          _
        // Predicated region
        $region17: #{lenet_forward.1} parent=11 // pred_check
          %p388 = pneg %p92
        $region18: #{lenet_forward.1} parent=11 // pred_check_branch
          %390 = sbr.rel (%p388) target = $region20
        $region19: #{lenet_forward.1} parent=11 // pred_region
          _
        $region20: #{lenet_forward.1} parent=11 // pred_fallthru
          _
        // Predicated region
        $region21: #{lenet_forward.1} parent=11 // pred_check
          %p391 = pneg %p113
        $region22: #{lenet_forward.1} parent=11 // pred_check_branch
          %393 = sbr.rel (%p391) target = $region24
        $region23: #{lenet_forward.1} parent=11 // pred_region
          _
        $region24: #{lenet_forward.1} parent=11 // pred_fallthru
          _
        // Predicated region
        $region25: #{lenet_forward.1} parent=11 // pred_check
          %p394 = pneg %p134
        $region26: #{lenet_forward.1} parent=11 // pred_check_branch
          %396 = sbr.rel (%p394) target = $region28
        $region27: #{lenet_forward.1} parent=11 // pred_region
          _
        $region28: #{lenet_forward.1} parent=11 // pred_fallthru
          _
        // Predicated region
        $region29: #{lenet_forward.1} parent=11 // pred_check
          %p397 = pneg %p155
        $region30: #{lenet_forward.1} parent=11 // pred_check_branch
          %399 = sbr.rel (%p397) target = $region32
        $region31: #{lenet_forward.1} parent=11 // pred_region
          _
        $region32: #{lenet_forward.1} parent=11 // pred_fallthru
          _
        // Predicated region
        $region33: #{lenet_forward.1} parent=11 // pred_check
          %p400 = pneg %p176
        $region34: #{lenet_forward.1} parent=11 // pred_check_branch
          %402 = sbr.rel (%p400) target = $region36
        $region35: #{lenet_forward.1} parent=11 // pred_region
          _
        $region36: #{lenet_forward.1} parent=11 // pred_fallthru
          _
        // Predicated region
        $region37: #{lenet_forward.1} parent=11 // pred_check
          %p403 = pneg %p197
        $region38: #{lenet_forward.1} parent=11 // pred_check_branch
          %405 = sbr.rel (%p403) target = $region40
        $region39: #{lenet_forward.1} parent=11 // pred_region
          _
        $region40: #{lenet_forward.1} parent=11 // pred_fallthru
          _
        // Predicated region
        $region41: #{lenet_forward.1} parent=11 // pred_check
          %p406 = pneg %p218
        $region42: #{lenet_forward.1} parent=11 // pred_check_branch
          %408 = sbr.rel (%p406) target = $region44
        $region43: #{lenet_forward.1} parent=11 // pred_region
          _
        $region44: #{lenet_forward.1} parent=11 // pred_fallthru
          _
        // Predicated region
        $region45: #{lenet_forward.1} parent=11 // pred_check
          %p409 = pneg %p239
        $region46: #{lenet_forward.1} parent=11 // pred_check_branch
          %411 = sbr.rel (%p409) target = $region48
        $region47: #{lenet_forward.1} parent=11 // pred_region
          _
        $region48: #{lenet_forward.1} parent=11 // pred_fallthru
          _
        // Predicated region
        $region49: #{lenet_forward.1} parent=11 // pred_check
          %p412 = pneg %p260
        $region50: #{lenet_forward.1} parent=11 // pred_check_branch
          %414 = sbr.rel (%p412) target = $region52
        $region51: #{lenet_forward.1} parent=11 // pred_region
          _
        $region52: #{lenet_forward.1} parent=11 // pred_fallthru
          _
        // Predicated region
        $region53: #{lenet_forward.1} parent=11 // pred_check
          %p415 = pneg %p281
        $region54: #{lenet_forward.1} parent=11 // pred_check_branch
          %417 = sbr.rel (%p415) target = $region56
        $region55: #{lenet_forward.1} parent=11 // pred_region
          _
        $region56: #{lenet_forward.1} parent=11 // pred_fallthru
          _
        // Predicated region
        $region57: #{lenet_forward.1} parent=11 // pred_check
          %p418 = pneg %p302
        $region58: #{lenet_forward.1} parent=11 // pred_check_branch
          %420 = sbr.rel (%p418) target = $region60
        $region59: #{lenet_forward.1} parent=11 // pred_region
          _
        $region60: #{lenet_forward.1} parent=11 // pred_fallthru
          _
        // Predicated region
        $region61: #{lenet_forward.1} parent=11 // pred_check
          %p421 = pneg %p323
        $region62: #{lenet_forward.1} parent=11 // pred_check_branch
          %423 = sbr.rel (%p421) target = $region64
        $region63: #{lenet_forward.1} parent=11 // pred_region
          _
        $region64: #{lenet_forward.1} parent=11 // pred_fallthru
          _
        // Predicated region
        $region65: #{lenet_forward.1} parent=11 // pred_check
          %p424 = pneg %p344
        $region66: #{lenet_forward.1} parent=11 // pred_check_branch
          %426 = sbr.rel (%p424) target = $region68
        $region67: #{lenet_forward.1} parent=11 // pred_region
          _
        $region68: #{lenet_forward.1} parent=11 // pred_fallthru
          _
      $region12: #{lenet_forward.1} parent=5 // pred_fallthru
        _
      %p427 = scmp.lt.s32.totalorder %s24, 2
      // Predicated region
      $region69: #{lenet_forward.1} parent=5 // pred_check
        %p428 = pneg %p427
      $region70: #{lenet_forward.1} parent=5 // pred_check_branch
        %430 = sbr.rel (%p428) target = $region72
      $region71: #{lenet_forward.1} parent=5 // pred_region
        // Predicated region
        $region73: #{lenet_forward.1} parent=71 // pred_check
          %p431 = pneg %p44
        $region74: #{lenet_forward.1} parent=71 // pred_check_branch
          %433 = sbr.rel (%p431) target = $region76
        $region75: #{lenet_forward.1} parent=71 // pred_region
          %p434 = scmp.lt.s32.totalorder %s24, 1
          %s435 = scalar_select %p434, %s24, 1
          %s436 = smul.addr %s435, 4
          %s437 = smul.addr %s436, 8
          %s438 = scalar_lea.vmem %s0, %s437
        $region76: #{lenet_forward.1} parent=71 // pred_fallthru
          _
      $region72: #{lenet_forward.1} parent=5 // pred_fallthru
        _
      %p439 = scmp.le.s32.totalorder 1, %s24
      %p440 = scmp.lt.s32.totalorder %s24, 3
      %p441 = pnand %p439, %p440
      %p442 = pneg %p441
      // Predicated region
      $region77: #{lenet_forward.1} parent=5 // pred_check
        _
      $region78: #{lenet_forward.1} parent=5 // pred_check_branch
        %444 = sbr.rel (%p441) target = $region80
      $region79: #{lenet_forward.1} parent=5 // pred_region
        %s445 = ssub.s32 %s24, 1
        %p446 = scmp.lt.s32.totalorder %s29, 1
        %s447 = scalar_select %p446, %s29, 1
        %s448 = smul.addr %s447, 4
        %s449 = smul.addr %s448, 8
        %s450 = scalar_lea.vmem %s0, %s449
        %p451 = pneg %p50
        %p452 = pneg %p47
        %p453 = pneg %p71
        %p454 = pneg %p68
        %p455 = pneg %p92
        %p456 = pneg %p89
        %p457 = pneg %p113
        %p458 = pneg %p110
        %p459 = pneg %p134
        %p460 = pneg %p131
        %p461 = pneg %p155
        %p462 = pneg %p152
        %p463 = pneg %p176
        %p464 = pneg %p173
        %p465 = pneg %p197
        %p466 = pneg %p194
        %p467 = pneg %p218
        %p468 = pneg %p215
        %p469 = pneg %p239
        %p470 = pneg %p236
        %p471 = pneg %p260
        %p472 = pneg %p257
        %p473 = pneg %p281
        %p474 = pneg %p278
        %p475 = pneg %p302
        %p476 = pneg %p299
        %p477 = pneg %p323
        %p478 = pneg %p320
        %p479 = pneg %p344
        %p480 = pneg %p341
        %p481 = pneg %p370
        %p482 = pneg %p367
        %s483 = sand.u32 %s357, 1
        %s484 = scalar_lea.sflag [#allocation5], %s483
        %s485 = sand.u32 %s357, 1
        %s486 = scalar_lea.vmem [#allocation4], %s485
        %p487 = scmp.lt.s32.totalorder %s29, 1
        %s488 = scalar_select %p487, %s29, 1
        %s489 = smul.addr %s488, 4
        %s490 = smul.addr %s489, 8
        %s491 = scalar_lea.vmem %s0, %s490
        %v493 = vld [vmem:[%s491] sm:$0xff]
        %v494 = vld [vmem:[%s491 + $0x8] sm:$0xff]
        %v495 = vld [vmem:[%s491 + $0x10] sm:$0xff]
        %v496 = vld [vmem:[%s491 + $0x1] sm:$0xff]
        %v497 = vld [vmem:[%s491 + $0x9] sm:$0xff]
        %v498 = vld [vmem:[%s491 + $0x11] sm:$0xff]
        %v499 = vld [vmem:[%s491 + $0x2] sm:$0xff]
        %v500 = vld [vmem:[%s491 + $0xa] sm:$0xff]
        %v501 = vld [vmem:[%s491 + $0x12] sm:$0xff]
        %v502 = vld [vmem:[%s491 + $0x3] sm:$0xff]
        %v503 = vld [vmem:[%s491 + $0xb] sm:$0xff]
        %v504 = vld [vmem:[%s491 + $0x13] sm:$0xff]
        %v505 = vld [vmem:[%s491 + $0x4] sm:$0xff]
        %v506 = vld [vmem:[%s491 + $0xc] sm:$0xff]
        %v507 = vld [vmem:[%s491 + $0x14] sm:$0xff]
        %511 = vrot.lane.b32.xlu0 %v496, 28
        %v512 = vpop.permute.xlu0 %511
        %513 = vrot.lane.b32.xlu0 %v497, 28
        %v514 = vpop.permute.xlu0 %513
        %515 = vrot.lane.b32.xlu0 %v498, 28
        %v516 = vpop.permute.xlu0 %515
        %523 = vrot.lane.b32.xlu0 %v499, 56
        %v524 = vpop.permute.xlu0 %523
        %525 = vrot.lane.b32.xlu0 %v500, 56
        %v526 = vpop.permute.xlu0 %525
        %527 = vrot.lane.b32.xlu0 %v501, 56
        %v528 = vpop.permute.xlu0 %527
        %535 = vrot.lane.b32.xlu0 %v502, 84
        %v536 = vpop.permute.xlu0 %535
        %537 = vrot.lane.b32.xlu0 %v503, 84
        %v538 = vpop.permute.xlu0 %537
        %539 = vrot.lane.b32.xlu0 %v504, 84
        %v540 = vpop.permute.xlu0 %539
        %547 = vrot.lane.b32.xlu0 %v505, 112
        %v548 = vpop.permute.xlu0 %547
        %549 = vrot.lane.b32.xlu0 %v506, 112
        %v550 = vpop.permute.xlu0 %549
        %551 = vrot.lane.b32.xlu0 %v507, 112
        %v552 = vpop.permute.xlu0 %551
        %vm556 = vcmask 228352
        %v557 = vsel %vm556, %v493, %v512
        %v558 = vsel %vm556, %v494, %v514
        %v559 = vsel %vm556, %v495, %v516
        %vm560 = vcmask 457728
        %v561 = vsel %vm560, %v557, %v524
        %v562 = vsel %vm560, %v558, %v526
        %v563 = vsel %vm560, %v559, %v528
        %vm564 = vcmask 687104
        %v565 = vsel %vm564, %v561, %v536
        %v566 = vsel %vm564, %v562, %v538
        %v567 = vsel %vm564, %v563, %v540
        %vm568 = vcmask 916480
        %v569 = vsel %vm568, %v565, %v548
        %v570 = vsel %vm568, %v566, %v550
        %v571 = vsel %vm568, %v567, %v552
        %v572 = vpack.c.bf16 %v570, %v569
        %v573 = vpack.c.bf16 %v550, %v548
        %v574 = vpack.c.bf16 %v571, %v571
        %v575 = vpack.c.bf16 %v552, %v552
        %v576 = vld [vmem:[%s1] sm:$0xff]
        %v577 = vld [vmem:[%s1 + $0x8] sm:$0xff]
        %v578 = vld [vmem:[%s1 + $0x10] sm:$0xff]
        %v579 = vld [vmem:[%s1 + $0x18] sm:$0xff]
        %v580 = vld [vmem:[%s1 + $0x20] sm:$0xff]
        %v581 = vld [vmem:[%s1 + $0x28] sm:$0xff]
        %v582 = vld [vmem:[%s1 + $0x30] sm:$0xff]
        %v583 = vld [vmem:[%s1 + $0x38] sm:$0xff]
        %v584 = vld [vmem:[%s1 + $0x40] sm:$0xff]
        %v585 = vld [vmem:[%s1 + $0x48] sm:$0xff]
        %v586 = vld [vmem:[%s1 + $0x50] sm:$0xff]
        %v587 = vld [vmem:[%s1 + $0x58] sm:$0xff]
        %v588 = vld [vmem:[%s1 + $0x60] sm:$0xff]
        %v589 = vld [vmem:[%s1 + $0x68] sm:$0xff]
        %v590 = vld [vmem:[%s1 + $0x70] sm:$0xff]
        %v591 = vld [vmem:[%s1 + $0x78] sm:$0xff]
        %v592 = vld [vmem:[%s1 + $0x80] sm:$0xff]
        %v593 = vld [vmem:[%s1 + $0x88] sm:$0x33]
        %v594 = vld [vmem:[%s2] sm:$0x3]
        %v596 = vlaneseq
        %v597 = vshrl.u32 %v596, 7
        %v598 = vsub.s32 0, %v597
        %v599 = vrot.slane %v594, %v598
        %v600 = vlaneseq
        %v601 = vshrl.u32 %v600, 7
        %v602 = vsub.s32 1, %v601
        %v603 = vrot.slane %v594, %v602
        %v624 = vunpack.c.l.b16 %v576
        %v625 = vunpack.c.h.b16 %v576
        %v626 = vunpack.c.l.b16 %v577
        %v627 = vunpack.c.h.b16 %v577
        %v628 = vunpack.c.l.b16 %v578
        %v629 = vunpack.c.h.b16 %v578
        %v630 = vunpack.c.l.b16 %v579
        %v631 = vunpack.c.h.b16 %v579
        %v632 = vunpack.c.l.b16 %v580
        %v633 = vunpack.c.h.b16 %v580
        %v634 = vunpack.c.l.b16 %v581
        %v635 = vunpack.c.h.b16 %v581
        %v636 = vunpack.c.l.b16 %v582
        %v637 = vunpack.c.h.b16 %v582
        %v638 = vunpack.c.l.b16 %v583
        %v639 = vunpack.c.h.b16 %v583
        %v640 = vunpack.c.l.b16 %v584
        %v641 = vunpack.c.h.b16 %v584
        %v642 = vunpack.c.l.b16 %v585
        %v643 = vunpack.c.h.b16 %v585
        %v644 = vunpack.c.l.b16 %v586
        %v645 = vunpack.c.h.b16 %v586
        %v646 = vunpack.c.l.b16 %v587
        %v647 = vunpack.c.h.b16 %v587
        %v648 = vunpack.c.l.b16 %v588
        %v649 = vunpack.c.h.b16 %v588
        %v650 = vunpack.c.l.b16 %v589
        %v651 = vunpack.c.h.b16 %v589
        %v652 = vunpack.c.l.b16 %v590
        %v653 = vunpack.c.h.b16 %v590
        %v654 = vunpack.c.l.b16 %v591
        %v655 = vunpack.c.h.b16 %v591
        %v656 = vunpack.c.l.b16 %v592
        %v657 = vunpack.c.h.b16 %v592
        %v658 = vunpack.c.l.b16 %v593
        %v659 = vunpack.c.h.b16 %v593
        %v660 = vpack.c.b16 %v626, %v624
        %v661 = vpack.c.b16 %v627, %v625
        %v662 = vpack.c.b16 %v630, %v628
        %v663 = vpack.c.b16 %v631, %v629
        %v664 = vpack.c.b16 %v634, %v632
        %v665 = vpack.c.b16 %v635, %v633
        %v666 = vpack.c.b16 %v638, %v636
        %v667 = vpack.c.b16 %v639, %v637
        %v668 = vpack.c.b16 %v642, %v640
        %v669 = vpack.c.b16 %v643, %v641
        %v670 = vpack.c.b16 %v646, %v644
        %v671 = vpack.c.b16 %v647, %v645
        %v672 = vpack.c.b16 %v650, %v648
        %v673 = vpack.c.b16 %v651, %v649
        %v674 = vpack.c.b16 %v654, %v652
        %v675 = vpack.c.b16 %v655, %v653
        %v676 = vpack.c.b16 %v658, %v656
        %v677 = vpack.c.b16 %v659, %v657
        %vm694 = vcmask 97280
        %v696 = vsel %vm694, %v573, 0
        %v699 = vsel %vm694, %v575, 0
        %vm701 = vcmask 1045504
        %v703 = vsel %vm701, %v676, 0
        %v706 = vsel %vm701, %v677, 0
        %708 = vmatprep.subr.bf16.mxu0 %v661
        %709 = vmatpush1.bf16.msra.mxu0 %v660
        %710 = vmatprep.subr.bf16.mxu0 %v663
        %711 = vmatpush1.bf16.msra.mxu0 %v662
        %712 = vmatprep.subr.bf16.mxu0 %v665
        %713 = vmatpush1.bf16.msra.mxu0 %v664
        %714 = vmatprep.subr.bf16.mxu0 %v667
        %715 = vmatpush1.bf16.msra.mxu0 %v666
        %716 = vmatprep.subr.bf16.mxu0 %v669
        %717 = vmatpush1.bf16.msra.mxu0 %v668
        %718 = vmatprep.subr.bf16.mxu0 %v671
        %719 = vmatpush1.bf16.msra.mxu0 %v670
        %720 = vmatprep.subr.bf16.mxu0 %v673
        %721 = vmatpush1.bf16.msra.mxu0 %v672
        %722 = vmatprep.subr.bf16.mxu0 %v675
        %723 = vmatpush1.bf16.msra.mxu0 %v674
        %724 = vmatprep.subr.bf16.mxu0 %v706
        %725 = vmatpush1.bf16.msra.mxu0 %v703
        %726 = vmatprep.subr.bf16.mxu0 0
        %727 = vmatpush1.bf16.msra.mxu0 0
        %728 = vmatprep.subr.bf16.mxu0 0
        %729 = vmatpush1.bf16.msra.mxu0 0
        %730 = vmatprep.subr.bf16.mxu0 0
        %731 = vmatpush1.bf16.msra.mxu0 0
        %732 = vmatprep.subr.bf16.mxu0 0
        %733 = vmatpush1.bf16.msra.mxu0 0
        %734 = vmatprep.subr.bf16.mxu0 0
        %735 = vmatpush1.bf16.msra.mxu0 0
        %736 = vmatprep.subr.bf16.mxu0 0
        %737 = vmatpush1.bf16.msra.mxu0 0
        %738 = vmatprep.subr.bf16.mxu0 0
        %739 = vmatpush1.bf16.msra.mxu0 0
        %740 = vmatprep.mubr.bf16.mxu0 %v696
        %741 = vmatmul.mubr.bf16.gmra.mrb[0].mxu0 %v572
        %v742 = vpop.f32.mrb[0].mxu0
        %v743 = vadd.f32 %v599, %v742
        %v744 = vpop.f32.mrb[0].mxu0
        %v745 = vadd.f32 %v603, %v744
        %v746 = vpop.f32.mrb[0].mxu0
        %v747 = vadd.f32 %v599, %v746
        %v748 = vpop.f32.mrb[0].mxu0
        %v749 = vadd.f32 %v603, %v748
        %750 = vmatprep.mubr.bf16.mxu0 %v699
        %751 = vmatmul.mubr.bf16.gmra.mrb[0].mxu0 %v574
        %v752 = vpop.f32.mrb[0].mxu0
        %v753 = vadd.f32 %v599, %v752
        %v754 = vpop.f32.mrb[0].mxu0
        %v755 = vadd.f32 %v603, %v754
        %v756 = vpop.f32.mrb[0].mxu0
        %v757 = vpop.f32.mrb[0].mxu0
        %758 = vdwg.mxu0
        %v759 = vxor.u32 %v743, 2147483648
        %v760 = vxor.u32 %v745, 2147483648
        %v761 = vxor.u32 %v747, 2147483648
        %v762 = vxor.u32 %v749, 2147483648
        %v763 = vxor.u32 %v753, 2147483648
        %v764 = vxor.u32 %v755, 2147483648
        %v765 = vmul.f32 %v759, 1.442695
        %v766 = vpow.pop %v765
        %v767 = vmul.f32 %v760, 1.442695
        %v768 = vpow.pop %v767
        %v769 = vmul.f32 %v761, 1.442695
        %v770 = vpow.pop %v769
        %v771 = vmul.f32 %v762, 1.442695
        %v772 = vpow.pop %v771
        %v773 = vmul.f32 %v763, 1.442695
        %v774 = vpow.pop %v773
        %v775 = vmul.f32 %v764, 1.442695
        %v776 = vpow.pop %v775
        %v777 = vadd.f32 %v766, 1.0
        %v778 = vadd.f32 %v768, 1.0
        %v779 = vadd.f32 %v770, 1.0
        %v780 = vadd.f32 %v772, 1.0
        %v781 = vadd.f32 %v774, 1.0
        %v782 = vadd.f32 %v776, 1.0
        %v783 = vrcp.pop %v777
        %v784 = vmul.f32 1.0, %v783
        %v785 = vrcp.pop %v778
        %v786 = vmul.f32 1.0, %v785
        %v787 = vrcp.pop %v779
        %v788 = vmul.f32 1.0, %v787
        %v789 = vrcp.pop %v780
        %v790 = vmul.f32 1.0, %v789
        %v791 = vrcp.pop %v781
        %v792 = vmul.f32 1.0, %v791
        %v793 = vrcp.pop %v782
        %v794 = vmul.f32 1.0, %v793
        %v795 = vpack.c.bf16 %v788, %v784
        %v796 = vpack.c.bf16 %v790, %v786
        %v797 = vpack.c.bf16 %v792, %v792
        %v798 = vpack.c.bf16 %v794, %v794
        %v799 = vld [vmem:[%s3] sm:$0xf]
        %v800 = vld [vmem:[%s3 + $0x4] sm:$0xf]
        %v801 = vld [vmem:[%s3 + $0x8] sm:$0xf]
        %v802 = vld [vmem:[%s3 + $0xc] sm:$0xf]
        %v803 = vld [vmem:[%s3 + $0x10] sm:$0xf]
        %v804 = vld [vmem:[%s3 + $0x14] sm:$0xf]
        %v805 = vld [vmem:[%s3 + $0x18] sm:$0xf]
        %v806 = vld [vmem:[%s3 + $0x1c] sm:$0xf]
        %v807 = vld [vmem:[%s3 + $0x20] sm:$0xf]
        %v808 = vld [vmem:[%s3 + $0x24] sm:$0xf]
        %v809 = vld [vmem:[%s3 + $0x28] sm:$0xf]
        %v810 = vld [vmem:[%s3 + $0x2c] sm:$0xf]
        %v811 = vld [vmem:[%s3 + $0x30] sm:$0xf]
        %v812 = vld [vmem:[%s3 + $0x34] sm:$0xf]
        %v813 = vld [vmem:[%s3 + $0x38] sm:$0xf]
        %v814 = vld [vmem:[%s3 + $0x3c] sm:$0xf]
        %v815 = vld [vmem:[%s3 + $0x40] sm:$0xf]
        %v816 = vld [vmem:[%s3 + $0x44] sm:$0xf]
        %v835 = vunpack.c.l.b16 %v799
        %v836 = vunpack.c.l.b16 %v800
        %v837 = vunpack.c.l.b16 %v801
        %v838 = vunpack.c.l.b16 %v802
        %v839 = vunpack.c.l.b16 %v803
        %v840 = vunpack.c.l.b16 %v804
        %v841 = vunpack.c.l.b16 %v805
        %v842 = vunpack.c.l.b16 %v806
        %v843 = vunpack.c.l.b16 %v807
        %v844 = vunpack.c.l.b16 %v808
        %v845 = vunpack.c.l.b16 %v809
        %v846 = vunpack.c.l.b16 %v810
        %v847 = vunpack.c.l.b16 %v811
        %v848 = vunpack.c.l.b16 %v812
        %v849 = vunpack.c.l.b16 %v813
        %v850 = vunpack.c.l.b16 %v814
        %v851 = vunpack.c.l.b16 %v815
        %v852 = vunpack.c.l.b16 %v816
        %v853 = vpack.c.b16 %v836, %v835
        %v854 = vpack.c.b16 %v838, %v837
        %v855 = vpack.c.b16 %v840, %v839
        %v856 = vpack.c.b16 %v842, %v841
        %v857 = vpack.c.b16 %v844, %v843
        %v858 = vpack.c.b16 %v846, %v845
        %v859 = vpack.c.b16 %v848, %v847
        %v860 = vpack.c.b16 %v850, %v849
        %v861 = vpack.c.b16 %v852, %v851
        %vm871 = vcmask 130048
        %v873 = vsel %vm871, %v796, 0
        %v876 = vsel %vm871, %v798, 0
        %878 = vmatprep.subr.bf16.mxu0 0
        %879 = vmatpush1.bf16.msra.mxu0 %v853
        %880 = vmatprep.subr.bf16.mxu0 0
        %881 = vmatpush1.bf16.msra.mxu0 %v854
        %882 = vmatprep.subr.bf16.mxu0 0
        %883 = vmatpush1.bf16.msra.mxu0 %v855
        %884 = vmatprep.subr.bf16.mxu0 0
        %885 = vmatpush1.bf16.msra.mxu0 %v856
        %886 = vmatprep.subr.bf16.mxu0 0
        %887 = vmatpush1.bf16.msra.mxu0 %v857
        %888 = vmatprep.subr.bf16.mxu0 0
        %889 = vmatpush1.bf16.msra.mxu0 %v858
        %890 = vmatprep.subr.bf16.mxu0 0
        %891 = vmatpush1.bf16.msra.mxu0 %v859
        %892 = vmatprep.subr.bf16.mxu0 0
        %893 = vmatpush1.bf16.msra.mxu0 %v860
        %894 = vmatprep.subr.bf16.mxu0 0
        %895 = vmatpush1.bf16.msra.mxu0 %v861
        %896 = vmatprep.subr.bf16.mxu0 0
        %897 = vmatpush1.bf16.msra.mxu0 0
        %898 = vmatprep.subr.bf16.mxu0 0
        %899 = vmatpush1.bf16.msra.mxu0 0
        %900 = vmatprep.subr.bf16.mxu0 0
        %901 = vmatpush1.bf16.msra.mxu0 0
        %902 = vmatprep.subr.bf16.mxu0 0
        %903 = vmatpush1.bf16.msra.mxu0 0
        %904 = vmatprep.subr.bf16.mxu0 0
        %905 = vmatpush1.bf16.msra.mxu0 0
        %906 = vmatprep.subr.bf16.mxu0 0
        %907 = vmatpush1.bf16.msra.mxu0 0
        %908 = vmatprep.subr.bf16.mxu0 0
        %909 = vmatpush1.bf16.msra.mxu0 0
        %910 = vmatprep.mubr.bf16.mxu0 %v873
        %911 = vmatmul.mubr.bf16.gmra.mrb[0].mxu0 %v795
        %v912 = vpop.f32.mrb[0].mxu0
        %v913 = vadd.f32 0.0, %v912
        %v914 = vpop.f32.mrb[0].mxu0
        %v915 = vpop.f32.mrb[0].mxu0
        %v916 = vadd.f32 0.0, %v915
        %v917 = vpop.f32.mrb[0].mxu0
        %918 = vmatprep.mubr.bf16.mxu0 %v876
        %919 = vmatmul.mubr.bf16.gmra.mrb[0].mxu0 %v797
        %v920 = vpop.f32.mrb[0].mxu0
        %v921 = vadd.f32 0.0, %v920
        %v922 = vpop.f32.mrb[0].mxu0
        %v923 = vpop.f32.mrb[0].mxu0
        %v924 = vpop.f32.mrb[0].mxu0
        %925 = vdwg.mxu0
        %v926 = vld [vmem:[%s4] sm:$0xf]
        %v927 = vld [vmem:[%s4 + $0x4] sm:$0xf]
        %v928 = vld [vmem:[%s4 + $0x8] sm:$0xf]
        %v929 = vld [vmem:[%s4 + $0xc] sm:$0xf]
        %v930 = vld [vmem:[%s4 + $0x10] sm:$0xf]
        %v931 = vld [vmem:[%s4 + $0x14] sm:$0xf]
        %v932 = vld [vmem:[%s4 + $0x18] sm:$0xf]
        %v933 = vld [vmem:[%s4 + $0x1c] sm:$0xf]
        %v934 = vld [vmem:[%s4 + $0x20] sm:$0xf]
        %v935 = vld [vmem:[%s4 + $0x24] sm:$0xf]
        %v936 = vld [vmem:[%s4 + $0x28] sm:$0xf]
        %v937 = vld [vmem:[%s4 + $0x2c] sm:$0xf]
        %v938 = vld [vmem:[%s4 + $0x30] sm:$0xf]
        %v939 = vld [vmem:[%s4 + $0x34] sm:$0xf]
        %v940 = vld [vmem:[%s4 + $0x38] sm:$0xf]
        %v941 = vld [vmem:[%s4 + $0x3c] sm:$0xf]
        %v942 = vld [vmem:[%s4 + $0x40] sm:$0xf]
        %v943 = vld [vmem:[%s4 + $0x44] sm:$0xf]
        %v962 = vunpack.c.l.b16 %v926
        %v963 = vunpack.c.l.b16 %v927
        %v964 = vunpack.c.l.b16 %v928
        %v965 = vunpack.c.l.b16 %v929
        %v966 = vunpack.c.l.b16 %v930
        %v967 = vunpack.c.l.b16 %v931
        %v968 = vunpack.c.l.b16 %v932
        %v969 = vunpack.c.l.b16 %v933
        %v970 = vunpack.c.l.b16 %v934
        %v971 = vunpack.c.l.b16 %v935
        %v972 = vunpack.c.l.b16 %v936
        %v973 = vunpack.c.l.b16 %v937
        %v974 = vunpack.c.l.b16 %v938
        %v975 = vunpack.c.l.b16 %v939
        %v976 = vunpack.c.l.b16 %v940
        %v977 = vunpack.c.l.b16 %v941
        %v978 = vunpack.c.l.b16 %v942
        %v979 = vunpack.c.l.b16 %v943
        %v980 = vpack.c.b16 %v963, %v962
        %v981 = vpack.c.b16 %v965, %v964
        %v982 = vpack.c.b16 %v967, %v966
        %v983 = vpack.c.b16 %v969, %v968
        %v984 = vpack.c.b16 %v971, %v970
        %v985 = vpack.c.b16 %v973, %v972
        %v986 = vpack.c.b16 %v975, %v974
        %v987 = vpack.c.b16 %v977, %v976
        %v988 = vpack.c.b16 %v979, %v978
        %998 = vmatprep.subr.bf16.mxu0 0
        %999 = vmatpush1.bf16.msra.mxu0 %v980
        %1000 = vmatprep.subr.bf16.mxu0 0
        %1001 = vmatpush1.bf16.msra.mxu0 %v981
        %1002 = vmatprep.subr.bf16.mxu0 0
        %1003 = vmatpush1.bf16.msra.mxu0 %v982
        %1004 = vmatprep.subr.bf16.mxu0 0
        %1005 = vmatpush1.bf16.msra.mxu0 %v983
        %1006 = vmatprep.subr.bf16.mxu0 0
        %1007 = vmatpush1.bf16.msra.mxu0 %v984
        %1008 = vmatprep.subr.bf16.mxu0 0
        %1009 = vmatpush1.bf16.msra.mxu0 %v985
        %1010 = vmatprep.subr.bf16.mxu0 0
        %1011 = vmatpush1.bf16.msra.mxu0 %v986
        %1012 = vmatprep.subr.bf16.mxu0 0
        %1013 = vmatpush1.bf16.msra.mxu0 %v987
        %1014 = vmatprep.subr.bf16.mxu0 0
        %1015 = vmatpush1.bf16.msra.mxu0 %v988
        %1016 = vmatprep.subr.bf16.mxu0 0
        %1017 = vmatpush1.bf16.msra.mxu0 0
        %1018 = vmatprep.subr.bf16.mxu0 0
        %1019 = vmatpush1.bf16.msra.mxu0 0
        %1020 = vmatprep.subr.bf16.mxu0 0
        %1021 = vmatpush1.bf16.msra.mxu0 0
        %1022 = vmatprep.subr.bf16.mxu0 0
        %1023 = vmatpush1.bf16.msra.mxu0 0
        %1024 = vmatprep.subr.bf16.mxu0 0
        %1025 = vmatpush1.bf16.msra.mxu0 0
        %1026 = vmatprep.subr.bf16.mxu0 0
        %1027 = vmatpush1.bf16.msra.mxu0 0
        %1028 = vmatprep.subr.bf16.mxu0 0
        %1029 = vmatpush1.bf16.msra.mxu0 0
        %1030 = vmatprep.mubr.bf16.mxu0 %v873
        %1031 = vmatmul.mubr.bf16.gmra.mrb[0].mxu0 %v795
        %v1032 = vpop.f32.mrb[0].mxu0
        %v1033 = vadd.f32 0.0, %v1032
        %v1034 = vpop.f32.mrb[0].mxu0
        %v1035 = vpop.f32.mrb[0].mxu0
        %v1036 = vadd.f32 0.0, %v1035
        %v1037 = vpop.f32.mrb[0].mxu0
        %1038 = vmatprep.mubr.bf16.mxu0 %v876
        %1039 = vmatmul.mubr.bf16.gmra.mrb[0].mxu0 %v797
        %v1040 = vpop.f32.mrb[0].mxu0
        %v1041 = vadd.f32 0.0, %v1040
        %v1042 = vpop.f32.mrb[0].mxu0
        %v1043 = vpop.f32.mrb[0].mxu0
        %v1044 = vpop.f32.mrb[0].mxu0
        %1045 = vdwg.mxu0
        %v1046 = vmax.f32 %v913, %v1033
        %v1047 = vmax.f32 %v916, %v1036
        %v1048 = vmax.f32 %v921, %v1041
        %vm1049 = vcmask 588800
        %1050 = vst.msk [vmem:[#allocation2] sm:$0xff] %vm1049, %v1046
        %1051 = vst.msk [vmem:[#allocation2 + $0x8] sm:$0xff] %vm1049, %v1047
        %1052 = vst.msk [vmem:[#allocation2 + $0x10] sm:$0xff] %vm1049, %v1048
        %v1053 = vld [vmem:[#allocation2] ss:$2 sm:$0xff]
        %s1054 = scalar_lea.vmem [#allocation2], 1
        %v1055 = vld [vmem:[%s1054] ss:$2 sm:$0xff]
        %v1056 = vmax.f32 %v1053, %v1055
        %s1057 = scalar_lea.vmem [#allocation2], 2
        %v1058 = vld [vmem:[%s1057] ss:$2 sm:$0xff]
        %s1059 = scalar_lea.vmem [#allocation2], 3
        %v1060 = vld [vmem:[%s1059] ss:$2 sm:$0xff]
        %v1061 = vmax.f32 %v1058, %v1060
        %s1062 = scalar_lea.vmem [#allocation2], 4
        %v1063 = vld [vmem:[%s1062] ss:$2 sm:$0xff]
        %s1064 = scalar_lea.vmem [#allocation2], 5
        %v1065 = vld [vmem:[%s1064] ss:$2 sm:$0xff]
        %v1066 = vmax.f32 %v1063, %v1065
        %s1067 = scalar_lea.vmem [#allocation2], 6
        %v1068 = vld [vmem:[%s1067] ss:$2 sm:$0xff]
        %s1069 = scalar_lea.vmem [#allocation2], 7
        %v1070 = vld [vmem:[%s1069] ss:$2 sm:$0xff]
        %v1071 = vmax.f32 %v1068, %v1070
        %s1072 = scalar_lea.vmem [#allocation2], 8
        %v1073 = vld [vmem:[%s1072] ss:$2 sm:$0xff]
        %s1074 = scalar_lea.vmem [#allocation2], 9
        %v1075 = vld [vmem:[%s1074] ss:$2 sm:$0xff]
        %v1076 = vmax.f32 %v1073, %v1075
        %1078 = vrot.lane.b32.xlu0 %v1061, 72
        %v1079 = vpop.permute.xlu0 %1078
        %1082 = vrot.lane.b32.xlu0 %v1066, 16
        %v1083 = vpop.permute.xlu0 %1082
        %1086 = vrot.lane.b32.xlu0 %v1071, 88
        %v1087 = vpop.permute.xlu0 %1086
        %1090 = vrot.lane.b32.xlu0 %v1076, 32
        %v1091 = vpop.permute.xlu0 %1090
        %v1093 = vsel %vm1049, %v1056, %v1079
        %v1094 = vsel %vm871, %v1079, %v1083
        %vm1095 = vcmask 719872
        %v1096 = vsel %vm1095, %v1094, %v1087
        %vm1097 = vcmask 261120
        %v1098 = vsel %vm1097, %v1087, %v1091
        %v1099 = vpack.c.bf16 %v1093, %v1093
        %v1100 = vpack.c.bf16 %v1096, %v1096
        %v1101 = vpack.c.bf16 %v1098, %v1098
        %v1102 = vld [vmem:[%s5] sm:$0xf]
        %v1103 = vld [vmem:[%s5 + $0x4] sm:$0xf]
        %v1104 = vld [vmem:[%s5 + $0x8] sm:$0xf]
        %v1105 = vld [vmem:[%s5 + $0xc] sm:$0xf]
        %v1106 = vld [vmem:[%s5 + $0x10] sm:$0xf]
        %v1107 = vld [vmem:[%s5 + $0x14] sm:$0xf]
        %v1108 = vld [vmem:[%s5 + $0x18] sm:$0xf]
        %v1109 = vld [vmem:[%s5 + $0x1c] sm:$0xf]
        %v1110 = vld [vmem:[%s5 + $0x20] sm:$0xf]
        %v1111 = vld [vmem:[%s5 + $0x24] sm:$0xf]
        %v1112 = vld [vmem:[%s5 + $0x28] sm:$0xf]
        %v1113 = vld [vmem:[%s5 + $0x2c] sm:$0xf]
        %v1114 = vld [vmem:[%s5 + $0x30] sm:$0xf]
        %v1115 = vld [vmem:[%s5 + $0x34] sm:$0xf]
        %v1116 = vld [vmem:[%s5 + $0x38] sm:$0xf]
        %v1117 = vld [vmem:[%s5 + $0x3c] sm:$0xf]
        %v1118 = vld [vmem:[%s5 + $0x40] sm:$0xf]
        %v1119 = vld [vmem:[%s5 + $0x44] sm:$0xf]
        %v1120 = vld [vmem:[%s5 + $0x48] sm:$0xf]
        %v1121 = vld [vmem:[%s5 + $0x4c] sm:$0xf]
        %v1122 = vld [vmem:[%s5 + $0x50] sm:$0xf]
        %v1123 = vld [vmem:[%s5 + $0x54] sm:$0xf]
        %v1124 = vld [vmem:[%s5 + $0x58] sm:$0xf]
        %v1125 = vld [vmem:[%s5 + $0x5c] sm:$0xf]
        %v1126 = vld [vmem:[%s5 + $0x60] sm:$0xf]
        %v1127 = vld [vmem:[%s5 + $0x64] sm:$0xf]
        %v1128 = vld [vmem:[%s5 + $0x68] sm:$0xf]
        %v1129 = vld [vmem:[%s5 + $0x6c] sm:$0xf]
        %v1130 = vld [vmem:[%s5 + $0x70] sm:$0xf]
        %v1131 = vld [vmem:[%s5 + $0x74] sm:$0xf]
        %v1132 = vld [vmem:[%s5 + $0x78] sm:$0xf]
        %v1133 = vld [vmem:[%s5 + $0x7c] sm:$0xf]
        %v1134 = vld [vmem:[%s5 + $0x80] sm:$0xf]
        %v1135 = vld [vmem:[%s5 + $0x84] sm:$0xf]
        %v1136 = vld [vmem:[%s5 + $0x88] sm:$0xf]
        %v1137 = vld [vmem:[%s5 + $0x8c] sm:$0xf]
        %v1138 = vld [vmem:[%s5 + $0x90] sm:$0xf]
        %v1139 = vld [vmem:[%s5 + $0x94] sm:$0xf]
        %v1140 = vld [vmem:[%s5 + $0x98] sm:$0xf]
        %v1141 = vld [vmem:[%s5 + $0x9c] sm:$0xf]
        %v1142 = vld [vmem:[%s5 + $0xa0] sm:$0xf]
        %v1143 = vld [vmem:[%s5 + $0xa4] sm:$0xf]
        %v1144 = vld [vmem:[%s5 + $0xa8] sm:$0xf]
        %v1145 = vld [vmem:[%s5 + $0xac] sm:$0xf]
        %v1146 = vld [vmem:[%s5 + $0xb0] sm:$0xf]
        %v1147 = vld [vmem:[%s6] sm:$0x1]
        %v1149 = vlaneseq
        %v1150 = vshrl.u32 %v1149, 7
        %v1151 = vsub.s32 0, %v1150
        %v1152 = vrot.slane %v1147, %v1151
        %v1199 = vunpack.c.l.b16 %v1102
        %v1200 = vunpack.c.l.b16 %v1103
        %v1201 = vunpack.c.l.b16 %v1104
        %v1202 = vunpack.c.l.b16 %v1105
        %v1203 = vunpack.c.l.b16 %v1106
        %v1204 = vunpack.c.l.b16 %v1107
        %v1205 = vunpack.c.l.b16 %v1108
        %v1206 = vunpack.c.l.b16 %v1109
        %v1207 = vunpack.c.l.b16 %v1110
        %v1208 = vunpack.c.l.b16 %v1111
        %v1209 = vunpack.c.l.b16 %v1112
        %v1210 = vunpack.c.l.b16 %v1113
        %v1211 = vunpack.c.l.b16 %v1114
        %v1212 = vunpack.c.l.b16 %v1115
        %v1213 = vunpack.c.l.b16 %v1116
        %v1214 = vunpack.c.l.b16 %v1117
        %v1215 = vunpack.c.l.b16 %v1118
        %v1216 = vunpack.c.l.b16 %v1119
        %v1217 = vunpack.c.l.b16 %v1120
        %v1218 = vunpack.c.l.b16 %v1121
        %v1219 = vunpack.c.l.b16 %v1122
        %v1220 = vunpack.c.l.b16 %v1123
        %v1221 = vunpack.c.l.b16 %v1124
        %v1222 = vunpack.c.l.b16 %v1125
        %v1223 = vunpack.c.l.b16 %v1126
        %v1224 = vunpack.c.l.b16 %v1127
        %v1225 = vunpack.c.l.b16 %v1128
        %v1226 = vunpack.c.l.b16 %v1129
        %v1227 = vunpack.c.l.b16 %v1130
        %v1228 = vunpack.c.l.b16 %v1131
        %v1229 = vunpack.c.l.b16 %v1132
        %v1230 = vunpack.c.l.b16 %v1133
        %v1231 = vunpack.c.l.b16 %v1134
        %v1232 = vunpack.c.l.b16 %v1135
        %v1233 = vunpack.c.l.b16 %v1136
        %v1234 = vunpack.c.l.b16 %v1137
        %v1235 = vunpack.c.l.b16 %v1138
        %v1236 = vunpack.c.l.b16 %v1139
        %v1237 = vunpack.c.l.b16 %v1140
        %v1238 = vunpack.c.l.b16 %v1141
        %v1239 = vunpack.c.l.b16 %v1142
        %v1240 = vunpack.c.l.b16 %v1143
        %v1241 = vunpack.c.l.b16 %v1144
        %v1242 = vunpack.c.l.b16 %v1145
        %v1243 = vunpack.c.l.b16 %v1146
        %v1244 = vpack.c.b16 %v1200, %v1199
        %v1245 = vpack.c.b16 %v1202, %v1201
        %v1246 = vpack.c.b16 %v1204, %v1203
        %v1247 = vpack.c.b16 %v1206, %v1205
        %v1248 = vpack.c.b16 %v1208, %v1207
        %v1249 = vpack.c.b16 %v1210, %v1209
        %v1250 = vpack.c.b16 %v1212, %v1211
        %v1251 = vpack.c.b16 %v1214, %v1213
        %v1252 = vpack.c.b16 %v1216, %v1215
        %v1253 = vpack.c.b16 %v1218, %v1217
        %v1254 = vpack.c.b16 %v1220, %v1219
        %v1255 = vpack.c.b16 %v1222, %v1221
        %v1256 = vpack.c.b16 %v1224, %v1223
        %v1257 = vpack.c.b16 %v1226, %v1225
        %v1258 = vpack.c.b16 %v1228, %v1227
        %v1259 = vpack.c.b16 %v1230, %v1229
        %v1260 = vpack.c.b16 %v1232, %v1231
        %v1261 = vpack.c.b16 %v1234, %v1233
        %v1262 = vpack.c.b16 %v1236, %v1235
        %v1263 = vpack.c.b16 %v1238, %v1237
        %v1264 = vpack.c.b16 %v1240, %v1239
        %v1265 = vpack.c.b16 %v1242, %v1241
        %v1266 = vpack.c.b16 %v1243, %v1243
        %vm1289 = vcmask 850944
        %v1291 = vsel %vm1289, %v1101, 0
        %vm1293 = vcmask 1043456
        %v1295 = vsel %vm1293, %v1266, 0
        %1297 = vmatprep.subr.bf16.mxu0 0
        %1298 = vmatpush1.bf16.msra.mxu0 %v1244
        %1299 = vmatprep.subr.bf16.mxu0 0
        %1300 = vmatpush1.bf16.msra.mxu0 %v1245
        %1301 = vmatprep.subr.bf16.mxu0 0
        %1302 = vmatpush1.bf16.msra.mxu0 %v1246
        %1303 = vmatprep.subr.bf16.mxu0 0
        %1304 = vmatpush1.bf16.msra.mxu0 %v1247
        %1305 = vmatprep.subr.bf16.mxu0 0
        %1306 = vmatpush1.bf16.msra.mxu0 %v1248
        %1307 = vmatprep.subr.bf16.mxu0 0
        %1308 = vmatpush1.bf16.msra.mxu0 %v1249
        %1309 = vmatprep.subr.bf16.mxu0 0
        %1310 = vmatpush1.bf16.msra.mxu0 %v1250
        %1311 = vmatprep.subr.bf16.mxu0 0
        %1312 = vmatpush1.bf16.msra.mxu0 %v1251
        %1313 = vmatprep.subr.bf16.mxu0 0
        %1314 = vmatpush1.bf16.msra.mxu0 %v1252
        %1315 = vmatprep.subr.bf16.mxu0 0
        %1316 = vmatpush1.bf16.msra.mxu0 %v1253
        %1317 = vmatprep.subr.bf16.mxu0 0
        %1318 = vmatpush1.bf16.msra.mxu0 %v1254
        %1319 = vmatprep.subr.bf16.mxu0 0
        %1320 = vmatpush1.bf16.msra.mxu0 %v1255
        %1321 = vmatprep.subr.bf16.mxu0 0
        %1322 = vmatpush1.bf16.msra.mxu0 %v1256
        %1323 = vmatprep.subr.bf16.mxu0 0
        %1324 = vmatpush1.bf16.msra.mxu0 %v1257
        %1325 = vmatprep.subr.bf16.mxu0 0
        %1326 = vmatpush1.bf16.msra.mxu0 %v1258
        %1327 = vmatprep.subr.bf16.mxu0 0
        %1328 = vmatpush1.bf16.msra.mxu0 %v1259
        %1329 = vmatprep.mubr.bf16.mxu0 %v1100
        %1330 = vmatmul.mubr.bf16.gmra.mrb[0].mxu0 %v1099
        %v1331 = vpop.f32.mrb[0].mxu0
        %v1332 = vadd.f32 %v1152, %v1331
        %v1333 = vpop.f32.mrb[0].mxu0
        %v1334 = vpop.f32.mrb[0].mxu0
        %v1335 = vpop.f32.mrb[0].mxu0
        %1336 = vdwg.mxu0
        %1337 = vmatprep.subr.bf16.mxu0 0
        %1338 = vmatpush1.bf16.msra.mxu0 %v1260
        %1339 = vmatprep.subr.bf16.mxu0 0
        %1340 = vmatpush1.bf16.msra.mxu0 %v1261
        %1341 = vmatprep.subr.bf16.mxu0 0
        %1342 = vmatpush1.bf16.msra.mxu0 %v1262
        %1343 = vmatprep.subr.bf16.mxu0 0
        %1344 = vmatpush1.bf16.msra.mxu0 %v1263
        %1345 = vmatprep.subr.bf16.mxu0 0
        %1346 = vmatpush1.bf16.msra.mxu0 %v1264
        %1347 = vmatprep.subr.bf16.mxu0 0
        %1348 = vmatpush1.bf16.msra.mxu0 %v1265
        %1349 = vmatprep.subr.bf16.mxu0 0
        %1350 = vmatpush1.bf16.msra.mxu0 %v1295
        %1351 = vmatprep.subr.bf16.mxu0 0
        %1352 = vmatpush1.bf16.msra.mxu0 0
        %1353 = vmatprep.subr.bf16.mxu0 0
        %1354 = vmatpush1.bf16.msra.mxu0 0
        %1355 = vmatprep.subr.bf16.mxu0 0
        %1356 = vmatpush1.bf16.msra.mxu0 0
        %1357 = vmatprep.subr.bf16.mxu0 0
        %1358 = vmatpush1.bf16.msra.mxu0 0
        %1359 = vmatprep.subr.bf16.mxu0 0
        %1360 = vmatpush1.bf16.msra.mxu0 0
        %1361 = vmatprep.subr.bf16.mxu0 0
        %1362 = vmatpush1.bf16.msra.mxu0 0
        %1363 = vmatprep.subr.bf16.mxu0 0
        %1364 = vmatpush1.bf16.msra.mxu0 0
        %1365 = vmatprep.subr.bf16.mxu0 0
        %1366 = vmatpush1.bf16.msra.mxu0 0
        %1367 = vmatprep.subr.bf16.mxu0 0
        %1368 = vmatpush1.bf16.msra.mxu0 0
        %1369 = vmatprep.mubr.bf16.mxu0 0
        %1370 = vmatmul.mubr.bf16.gmra.mrb[0].mxu0 %v1291
        %v1371 = vpop.f32.mrb[0].mxu0
        %v1372 = vadd.f32 %v1332, %v1371
        %v1373 = vpop.f32.mrb[0].mxu0
        %v1374 = vpop.f32.mrb[0].mxu0
        %v1375 = vpop.f32.mrb[0].mxu0
        %1376 = vdwg.mxu0
        %v1377 = vxor.u32 %v1372, 2147483648
        %v1378 = vmul.f32 %v1377, 1.442695
        %v1379 = vpow.pop %v1378
        %v1380 = vadd.f32 %v1379, 1.0
        %v1381 = vrcp.pop %v1380
        %v1382 = vmul.f32 1.0, %v1381
        %v1383 = vpack.c.bf16 %v1382, %v1382
        %v1384 = vld [vmem:[%s7] sm:$0xf]
        %v1385 = vld [vmem:[%s7 + $0x4] sm:$0xf]
        %v1386 = vld [vmem:[%s7 + $0x8] sm:$0xf]
        %v1387 = vld [vmem:[%s7 + $0xc] sm:$0xf]
        %v1388 = vld [vmem:[%s7 + $0x10] sm:$0xf]
        %v1389 = vld [vmem:[%s7 + $0x14] sm:$0xf]
        %v1390 = vld [vmem:[%s7 + $0x18] sm:$0xf]
        %v1391 = vld [vmem:[%s7 + $0x1c] sm:$0xf]
        %v1392 = vld [vmem:[%s7 + $0x20] sm:$0xf]
        %v1393 = vld [vmem:[%s7 + $0x24] sm:$0xf]
        %v1394 = vld [vmem:[%s7 + $0x28] sm:$0xf]
        %v1395 = vld [vmem:[%s7 + $0x2c] sm:$0xf]
        %v1396 = vld [vmem:[%s7 + $0x30] sm:$0xf]
        %v1397 = vld [vmem:[%s7 + $0x34] sm:$0xf]
        %v1398 = vld [vmem:[%s7 + $0x38] sm:$0xf]
        %v1399 = vld [vmem:[%s7 + $0x3c] sm:$0xf]
        %v1416 = vunpack.c.l.b16 %v1384
        %v1417 = vunpack.c.l.b16 %v1385
        %v1418 = vunpack.c.l.b16 %v1386
        %v1419 = vunpack.c.l.b16 %v1387
        %v1420 = vunpack.c.l.b16 %v1388
        %v1421 = vunpack.c.l.b16 %v1389
        %v1422 = vunpack.c.l.b16 %v1390
        %v1423 = vunpack.c.l.b16 %v1391
        %v1424 = vunpack.c.l.b16 %v1392
        %v1425 = vunpack.c.l.b16 %v1393
        %v1426 = vunpack.c.l.b16 %v1394
        %v1427 = vunpack.c.l.b16 %v1395
        %v1428 = vunpack.c.l.b16 %v1396
        %v1429 = vunpack.c.l.b16 %v1397
        %v1430 = vunpack.c.l.b16 %v1398
        %v1431 = vunpack.c.l.b16 %v1399
        %v1432 = vpack.c.b16 %v1417, %v1416
        %v1433 = vpack.c.b16 %v1419, %v1418
        %v1434 = vpack.c.b16 %v1421, %v1420
        %v1435 = vpack.c.b16 %v1423, %v1422
        %v1436 = vpack.c.b16 %v1425, %v1424
        %v1437 = vpack.c.b16 %v1427, %v1426
        %v1438 = vpack.c.b16 %v1429, %v1428
        %v1439 = vpack.c.b16 %v1431, %v1430
        %1448 = vmatprep.subr.bf16.mxu0 0
        %1449 = vmatpush1.bf16.msra.mxu0 %v1432
        %1450 = vmatprep.subr.bf16.mxu0 0
        %1451 = vmatpush1.bf16.msra.mxu0 %v1433
        %1452 = vmatprep.subr.bf16.mxu0 0
        %1453 = vmatpush1.bf16.msra.mxu0 %v1434
        %1454 = vmatprep.subr.bf16.mxu0 0
        %1455 = vmatpush1.bf16.msra.mxu0 %v1435
        %1456 = vmatprep.subr.bf16.mxu0 0
        %1457 = vmatpush1.bf16.msra.mxu0 %v1436
        %1458 = vmatprep.subr.bf16.mxu0 0
        %1459 = vmatpush1.bf16.msra.mxu0 %v1437
        %1460 = vmatprep.subr.bf16.mxu0 0
        %1461 = vmatpush1.bf16.msra.mxu0 %v1438
        %1462 = vmatprep.subr.bf16.mxu0 0
        %1463 = vmatpush1.bf16.msra.mxu0 %v1439
        %1464 = vmatprep.subr.bf16.mxu0 0
        %1465 = vmatpush1.bf16.msra.mxu0 0
        %1466 = vmatprep.subr.bf16.mxu0 0
        %1467 = vmatpush1.bf16.msra.mxu0 0
        %1468 = vmatprep.subr.bf16.mxu0 0
        %1469 = vmatpush1.bf16.msra.mxu0 0
        %1470 = vmatprep.subr.bf16.mxu0 0
        %1471 = vmatpush1.bf16.msra.mxu0 0
        %1472 = vmatprep.subr.bf16.mxu0 0
        %1473 = vmatpush1.bf16.msra.mxu0 0
        %1474 = vmatprep.subr.bf16.mxu0 0
        %1475 = vmatpush1.bf16.msra.mxu0 0
        %1476 = vmatprep.subr.bf16.mxu0 0
        %1477 = vmatpush1.bf16.msra.mxu0 0
        %1478 = vmatprep.subr.bf16.mxu0 0
        %1479 = vmatpush1.bf16.msra.mxu0 0
        %1480 = vmatprep.mubr.bf16.mxu0 0
        %1481 = vmatmul.mubr.bf16.gmra.mrb[0].mxu0 %v1383
        %v1482 = vpop.f32.mrb[0].mxu0
        %v1483 = vadd.f32 0.0, %v1482
        %v1484 = vpop.f32.mrb[0].mxu0
        %v1485 = vpop.f32.mrb[0].mxu0
        %v1486 = vpop.f32.mrb[0].mxu0
        %1487 = vdwg.mxu0
        %v1488 = vld [vmem:[%s8] sm:$0xf]
        %v1489 = vld [vmem:[%s8 + $0x4] sm:$0xf]
        %v1490 = vld [vmem:[%s8 + $0x8] sm:$0xf]
        %v1491 = vld [vmem:[%s8 + $0xc] sm:$0xf]
        %v1492 = vld [vmem:[%s8 + $0x10] sm:$0xf]
        %v1493 = vld [vmem:[%s8 + $0x14] sm:$0xf]
        %v1494 = vld [vmem:[%s8 + $0x18] sm:$0xf]
        %v1495 = vld [vmem:[%s8 + $0x1c] sm:$0xf]
        %v1496 = vld [vmem:[%s8 + $0x20] sm:$0xf]
        %v1497 = vld [vmem:[%s8 + $0x24] sm:$0xf]
        %v1498 = vld [vmem:[%s8 + $0x28] sm:$0xf]
        %v1499 = vld [vmem:[%s8 + $0x2c] sm:$0xf]
        %v1500 = vld [vmem:[%s8 + $0x30] sm:$0xf]
        %v1501 = vld [vmem:[%s8 + $0x34] sm:$0xf]
        %v1502 = vld [vmem:[%s8 + $0x38] sm:$0xf]
        %v1503 = vld [vmem:[%s8 + $0x3c] sm:$0xf]
        %v1520 = vunpack.c.l.b16 %v1488
        %v1521 = vunpack.c.l.b16 %v1489
        %v1522 = vunpack.c.l.b16 %v1490
        %v1523 = vunpack.c.l.b16 %v1491
        %v1524 = vunpack.c.l.b16 %v1492
        %v1525 = vunpack.c.l.b16 %v1493
        %v1526 = vunpack.c.l.b16 %v1494
        %v1527 = vunpack.c.l.b16 %v1495
        %v1528 = vunpack.c.l.b16 %v1496
        %v1529 = vunpack.c.l.b16 %v1497
        %v1530 = vunpack.c.l.b16 %v1498
        %v1531 = vunpack.c.l.b16 %v1499
        %v1532 = vunpack.c.l.b16 %v1500
        %v1533 = vunpack.c.l.b16 %v1501
        %v1534 = vunpack.c.l.b16 %v1502
        %v1535 = vunpack.c.l.b16 %v1503
        %v1536 = vpack.c.b16 %v1521, %v1520
        %v1537 = vpack.c.b16 %v1523, %v1522
        %v1538 = vpack.c.b16 %v1525, %v1524
        %v1539 = vpack.c.b16 %v1527, %v1526
        %v1540 = vpack.c.b16 %v1529, %v1528
        %v1541 = vpack.c.b16 %v1531, %v1530
        %v1542 = vpack.c.b16 %v1533, %v1532
        %v1543 = vpack.c.b16 %v1535, %v1534
        %1552 = vmatprep.subr.bf16.mxu0 0
        %1553 = vmatpush1.bf16.msra.mxu0 %v1536
        %1554 = vmatprep.subr.bf16.mxu0 0
        %1555 = vmatpush1.bf16.msra.mxu0 %v1537
        %1556 = vmatprep.subr.bf16.mxu0 0
        %1557 = vmatpush1.bf16.msra.mxu0 %v1538
        %1558 = vmatprep.subr.bf16.mxu0 0
        %1559 = vmatpush1.bf16.msra.mxu0 %v1539
        %1560 = vmatprep.subr.bf16.mxu0 0
        %1561 = vmatpush1.bf16.msra.mxu0 %v1540
        %1562 = vmatprep.subr.bf16.mxu0 0
        %1563 = vmatpush1.bf16.msra.mxu0 %v1541
        %1564 = vmatprep.subr.bf16.mxu0 0
        %1565 = vmatpush1.bf16.msra.mxu0 %v1542
        %1566 = vmatprep.subr.bf16.mxu0 0
        %1567 = vmatpush1.bf16.msra.mxu0 %v1543
        %1568 = vmatprep.subr.bf16.mxu0 0
        %1569 = vmatpush1.bf16.msra.mxu0 0
        %1570 = vmatprep.subr.bf16.mxu0 0
        %1571 = vmatpush1.bf16.msra.mxu0 0
        %1572 = vmatprep.subr.bf16.mxu0 0
        %1573 = vmatpush1.bf16.msra.mxu0 0
        %1574 = vmatprep.subr.bf16.mxu0 0
        %1575 = vmatpush1.bf16.msra.mxu0 0
        %1576 = vmatprep.subr.bf16.mxu0 0
        %1577 = vmatpush1.bf16.msra.mxu0 0
        %1578 = vmatprep.subr.bf16.mxu0 0
        %1579 = vmatpush1.bf16.msra.mxu0 0
        %1580 = vmatprep.subr.bf16.mxu0 0
        %1581 = vmatpush1.bf16.msra.mxu0 0
        %1582 = vmatprep.subr.bf16.mxu0 0
        %1583 = vmatpush1.bf16.msra.mxu0 0
        %1584 = vmatprep.mubr.bf16.mxu0 0
        %1585 = vmatmul.mubr.bf16.gmra.mrb[0].mxu0 %v1383
        %v1586 = vpop.f32.mrb[0].mxu0
        %v1587 = vadd.f32 0.0, %v1586
        %v1588 = vpop.f32.mrb[0].mxu0
        %v1589 = vpop.f32.mrb[0].mxu0
        %v1590 = vpop.f32.mrb[0].mxu0
        %1591 = vdwg.mxu0
        %v1592 = vmax.f32 %v1483, %v1587
        %vm1593 = vcmask 523264
        %1594 = vst.msk [vmem:[#allocation3] sm:$0xff] %vm1593, %v1592
        %v1595 = vld [vmem:[#allocation3] sm:$0x1]
        %v1596 = vld [vmem:[#allocation3 + $0x1] sm:$0x1]
        %v1597 = vmax.f32 %v1595, %v1596
        %v1598 = vld [vmem:[#allocation3 + $0x2] sm:$0x1]
        %v1599 = vld [vmem:[#allocation3 + $0x3] sm:$0x1]
        %v1600 = vmax.f32 %v1598, %v1599
        %v1601 = vld [vmem:[#allocation3 + $0x4] sm:$0x1]
        %v1602 = vld [vmem:[#allocation3 + $0x5] sm:$0x1]
        %v1603 = vmax.f32 %v1601, %v1602
        %v1604 = vld [vmem:[#allocation3 + $0x6] sm:$0x1]
        %v1605 = vld [vmem:[#allocation3 + $0x7] sm:$0x1]
        %v1606 = vmax.f32 %v1604, %v1605
        %1608 = vrot.lane.b32.xlu0 %v1600, 64
        %v1609 = vpop.permute.xlu0 %1608
        %1612 = vrot.lane.b32.xlu0 %v1606, 64
        %v1613 = vpop.permute.xlu0 %1612
        %v1615 = vsel %vm1593, %v1597, %v1609
        %v1616 = vsel %vm1593, %v1603, %v1613
        %v1617 = vpack.c.bf16 %v1615, %v1615
        %v1618 = vpack.c.bf16 %v1616, %v1616
        %v1619 = vld [vmem:[%s9] sm:$0xf]
        %v1620 = vld [vmem:[%s9 + $0x4] sm:$0xf]
        %v1621 = vld [vmem:[%s9 + $0x8] sm:$0xf]
        %v1622 = vld [vmem:[%s9 + $0xc] sm:$0xf]
        %v1623 = vld [vmem:[%s9 + $0x10] sm:$0xf]
        %v1624 = vld [vmem:[%s9 + $0x14] sm:$0xf]
        %v1625 = vld [vmem:[%s9 + $0x18] sm:$0xf]
        %v1626 = vld [vmem:[%s9 + $0x1c] sm:$0xf]
        %v1627 = vld [vmem:[%s9 + $0x20] sm:$0xf]
        %v1628 = vld [vmem:[%s9 + $0x24] sm:$0xf]
        %v1629 = vld [vmem:[%s9 + $0x28] sm:$0xf]
        %v1630 = vld [vmem:[%s9 + $0x2c] sm:$0xf]
        %v1631 = vld [vmem:[%s9 + $0x30] sm:$0xf]
        %v1632 = vld [vmem:[%s9 + $0x34] sm:$0xf]
        %v1633 = vld [vmem:[%s9 + $0x38] sm:$0xf]
        %v1634 = vld [vmem:[%s9 + $0x3c] sm:$0xf]
        %v1635 = vld [vmem:[%s9 + $0x40] sm:$0xf]
        %v1636 = vld [vmem:[%s9 + $0x44] sm:$0xf]
        %v1637 = vld [vmem:[%s9 + $0x48] sm:$0xf]
        %v1638 = vld [vmem:[%s9 + $0x4c] sm:$0xf]
        %v1639 = vld [vmem:[%s9 + $0x50] sm:$0xf]
        %v1640 = vld [vmem:[%s9 + $0x54] sm:$0xf]
        %v1641 = vld [vmem:[%s9 + $0x58] sm:$0xf]
        %v1642 = vld [vmem:[%s9 + $0x5c] sm:$0xf]
        %v1643 = vld [vmem:[%s9 + $0x60] sm:$0xf]
        %v1644 = vld [vmem:[%s9 + $0x64] sm:$0xf]
        %v1645 = vld [vmem:[%s9 + $0x68] sm:$0xf]
        %v1646 = vld [vmem:[%s9 + $0x6c] sm:$0xf]
        %v1647 = vld [vmem:[%s9 + $0x70] sm:$0xf]
        %v1648 = vld [vmem:[%s9 + $0x74] sm:$0xf]
        %v1649 = vld [vmem:[%s9 + $0x78] sm:$0xf]
        %v1650 = vld [vmem:[%s9 + $0x7c] sm:$0xf]
        %v1651 = vld [vmem:[%s10] sm:$0x1]
        %v1684 = vunpack.c.l.b16 %v1619
        %v1685 = vunpack.c.l.b16 %v1620
        %v1686 = vunpack.c.l.b16 %v1621
        %v1687 = vunpack.c.l.b16 %v1622
        %v1688 = vunpack.c.l.b16 %v1623
        %v1689 = vunpack.c.l.b16 %v1624
        %v1690 = vunpack.c.l.b16 %v1625
        %v1691 = vunpack.c.l.b16 %v1626
        %v1692 = vunpack.c.l.b16 %v1627
        %v1693 = vunpack.c.l.b16 %v1628
        %v1694 = vunpack.c.l.b16 %v1629
        %v1695 = vunpack.c.l.b16 %v1630
        %v1696 = vunpack.c.l.b16 %v1631
        %v1697 = vunpack.c.l.b16 %v1632
        %v1698 = vunpack.c.l.b16 %v1633
        %v1699 = vunpack.c.l.b16 %v1634
        %v1700 = vunpack.c.l.b16 %v1635
        %v1701 = vunpack.c.l.b16 %v1636
        %v1702 = vunpack.c.l.b16 %v1637
        %v1703 = vunpack.c.l.b16 %v1638
        %v1704 = vunpack.c.l.b16 %v1639
        %v1705 = vunpack.c.l.b16 %v1640
        %v1706 = vunpack.c.l.b16 %v1641
        %v1707 = vunpack.c.l.b16 %v1642
        %v1708 = vunpack.c.l.b16 %v1643
        %v1709 = vunpack.c.l.b16 %v1644
        %v1710 = vunpack.c.l.b16 %v1645
        %v1711 = vunpack.c.l.b16 %v1646
        %v1712 = vunpack.c.l.b16 %v1647
        %v1713 = vunpack.c.l.b16 %v1648
        %v1714 = vunpack.c.l.b16 %v1649
        %v1715 = vunpack.c.l.b16 %v1650
        %v1716 = vpack.c.b16 %v1685, %v1684
        %v1717 = vpack.c.b16 %v1687, %v1686
        %v1718 = vpack.c.b16 %v1689, %v1688
        %v1719 = vpack.c.b16 %v1691, %v1690
        %v1720 = vpack.c.b16 %v1693, %v1692
        %v1721 = vpack.c.b16 %v1695, %v1694
        %v1722 = vpack.c.b16 %v1697, %v1696
        %v1723 = vpack.c.b16 %v1699, %v1698
        %v1724 = vpack.c.b16 %v1701, %v1700
        %v1725 = vpack.c.b16 %v1703, %v1702
        %v1726 = vpack.c.b16 %v1705, %v1704
        %v1727 = vpack.c.b16 %v1707, %v1706
        %v1728 = vpack.c.b16 %v1709, %v1708
        %v1729 = vpack.c.b16 %v1711, %v1710
        %v1730 = vpack.c.b16 %v1713, %v1712
        %v1731 = vpack.c.b16 %v1715, %v1714
        %1748 = vmatprep.subr.bf16.mxu0 0
        %1749 = vmatpush1.bf16.msra.mxu0 %v1716
        %1750 = vmatprep.subr.bf16.mxu0 0
        %1751 = vmatpush1.bf16.msra.mxu0 %v1717
        %1752 = vmatprep.subr.bf16.mxu0 0
        %1753 = vmatpush1.bf16.msra.mxu0 %v1718
        %1754 = vmatprep.subr.bf16.mxu0 0
        %1755 = vmatpush1.bf16.msra.mxu0 %v1719
        %1756 = vmatprep.subr.bf16.mxu0 0
        %1757 = vmatpush1.bf16.msra.mxu0 %v1720
        %1758 = vmatprep.subr.bf16.mxu0 0
        %1759 = vmatpush1.bf16.msra.mxu0 %v1721
        %1760 = vmatprep.subr.bf16.mxu0 0
        %1761 = vmatpush1.bf16.msra.mxu0 %v1722
        %1762 = vmatprep.subr.bf16.mxu0 0
        %1763 = vmatpush1.bf16.msra.mxu0 %v1723
        %1764 = vmatprep.subr.bf16.mxu0 0
        %1765 = vmatpush1.bf16.msra.mxu0 %v1724
        %1766 = vmatprep.subr.bf16.mxu0 0
        %1767 = vmatpush1.bf16.msra.mxu0 %v1725
        %1768 = vmatprep.subr.bf16.mxu0 0
        %1769 = vmatpush1.bf16.msra.mxu0 %v1726
        %1770 = vmatprep.subr.bf16.mxu0 0
        %1771 = vmatpush1.bf16.msra.mxu0 %v1727
        %1772 = vmatprep.subr.bf16.mxu0 0
        %1773 = vmatpush1.bf16.msra.mxu0 %v1728
        %1774 = vmatprep.subr.bf16.mxu0 0
        %1775 = vmatpush1.bf16.msra.mxu0 %v1729
        %1776 = vmatprep.subr.bf16.mxu0 0
        %1777 = vmatpush1.bf16.msra.mxu0 %v1730
        %1778 = vmatprep.subr.bf16.mxu0 0
        %1779 = vmatpush1.bf16.msra.mxu0 %v1731
        %1780 = vmatprep.mubr.bf16.mxu0 %v1618
        %1781 = vmatmul.mubr.bf16.gmra.mrb[0].mxu0 %v1617
        %v1782 = vpop.f32.mrb[0].mxu0
        %v1783 = vadd.f32 %v1651, %v1782
        %v1784 = vpop.f32.mrb[0].mxu0
        %v1785 = vpop.f32.mrb[0].mxu0
        %v1786 = vpop.f32.mrb[0].mxu0
        %1787 = vdwg.mxu0
        %v1788 = vxor.u32 %v1783, 2147483648
        %v1789 = vmul.f32 %v1788, 1.442695
        %v1790 = vpow.pop %v1789
        %v1791 = vadd.f32 %v1790, 1.0
        %v1792 = vrcp.pop %v1791
        %v1793 = vmul.f32 1.0, %v1792
        %v1794 = vpack.c.bf16 %v1793, %v1793
        %v1795 = vld [vmem:[%s11] sm:$0xf]
        %v1796 = vld [vmem:[%s11 + $0x4] sm:$0xf]
        %v1797 = vld [vmem:[%s11 + $0x8] sm:$0xf]
        %v1798 = vld [vmem:[%s11 + $0xc] sm:$0xf]
        %v1799 = vld [vmem:[%s11 + $0x10] sm:$0xf]
        %v1800 = vld [vmem:[%s11 + $0x14] sm:$0xf]
        %v1801 = vld [vmem:[%s11 + $0x18] sm:$0xf]
        %v1802 = vld [vmem:[%s11 + $0x1c] sm:$0xf]
        %v1803 = vld [vmem:[%s11 + $0x20] sm:$0xf]
        %v1804 = vld [vmem:[%s11 + $0x24] sm:$0xf]
        %v1805 = vld [vmem:[%s11 + $0x28] sm:$0xf]
        %v1806 = vld [vmem:[%s11 + $0x2c] sm:$0xf]
        %v1807 = vld [vmem:[%s11 + $0x30] sm:$0xf]
        %v1808 = vld [vmem:[%s11 + $0x34] sm:$0xf]
        %v1809 = vld [vmem:[%s11 + $0x38] sm:$0xf]
        %v1810 = vld [vmem:[%s12] sm:$0x1]
        %v1826 = vunpack.c.l.b16 %v1795
        %v1827 = vunpack.c.l.b16 %v1796
        %v1828 = vunpack.c.l.b16 %v1797
        %v1829 = vunpack.c.l.b16 %v1798
        %v1830 = vunpack.c.l.b16 %v1799
        %v1831 = vunpack.c.l.b16 %v1800
        %v1832 = vunpack.c.l.b16 %v1801
        %v1833 = vunpack.c.l.b16 %v1802
        %v1834 = vunpack.c.l.b16 %v1803
        %v1835 = vunpack.c.l.b16 %v1804
        %v1836 = vunpack.c.l.b16 %v1805
        %v1837 = vunpack.c.l.b16 %v1806
        %v1838 = vunpack.c.l.b16 %v1807
        %v1839 = vunpack.c.l.b16 %v1808
        %v1840 = vunpack.c.l.b16 %v1809
        %v1841 = vpack.c.b16 %v1827, %v1826
        %v1842 = vpack.c.b16 %v1829, %v1828
        %v1843 = vpack.c.b16 %v1831, %v1830
        %v1844 = vpack.c.b16 %v1833, %v1832
        %v1845 = vpack.c.b16 %v1835, %v1834
        %v1846 = vpack.c.b16 %v1837, %v1836
        %v1847 = vpack.c.b16 %v1839, %v1838
        %v1848 = vpack.c.b16 %v1840, %v1840
        %vm1856 = vcmask 982016
        %v1858 = vsel %vm1856, %v1794, 0
        %v1861 = vsel %vm1293, %v1848, 0
        %1863 = vmatprep.subr.bf16.mxu0 0
        %1864 = vmatpush1.bf16.msra.mxu0 %v1841
        %1865 = vmatprep.subr.bf16.mxu0 0
        %1866 = vmatpush1.bf16.msra.mxu0 %v1842
        %1867 = vmatprep.subr.bf16.mxu0 0
        %1868 = vmatpush1.bf16.msra.mxu0 %v1843
        %1869 = vmatprep.subr.bf16.mxu0 0
        %1870 = vmatpush1.bf16.msra.mxu0 %v1844
        %1871 = vmatprep.subr.bf16.mxu0 0
        %1872 = vmatpush1.bf16.msra.mxu0 %v1845
        %1873 = vmatprep.subr.bf16.mxu0 0
        %1874 = vmatpush1.bf16.msra.mxu0 %v1846
        %1875 = vmatprep.subr.bf16.mxu0 0
        %1876 = vmatpush1.bf16.msra.mxu0 %v1847
        %1877 = vmatprep.subr.bf16.mxu0 0
        %1878 = vmatpush1.bf16.msra.mxu0 %v1861
        %1879 = vmatprep.subr.bf16.mxu0 0
        %1880 = vmatpush1.bf16.msra.mxu0 0
        %1881 = vmatprep.subr.bf16.mxu0 0
        %1882 = vmatpush1.bf16.msra.mxu0 0
        %1883 = vmatprep.subr.bf16.mxu0 0
        %1884 = vmatpush1.bf16.msra.mxu0 0
        %1885 = vmatprep.subr.bf16.mxu0 0
        %1886 = vmatpush1.bf16.msra.mxu0 0
        %1887 = vmatprep.subr.bf16.mxu0 0
        %1888 = vmatpush1.bf16.msra.mxu0 0
        %1889 = vmatprep.subr.bf16.mxu0 0
        %1890 = vmatpush1.bf16.msra.mxu0 0
        %1891 = vmatprep.subr.bf16.mxu0 0
        %1892 = vmatpush1.bf16.msra.mxu0 0
        %1893 = vmatprep.subr.bf16.mxu0 0
        %1894 = vmatpush1.bf16.msra.mxu0 0
        %1895 = vmatprep.mubr.bf16.mxu0 0
        %1896 = vmatmul.mubr.bf16.gmra.mrb[0].mxu0 %v1858
        %v1897 = vpop.f32.mrb[0].mxu0
        %v1898 = vadd.f32 %v1810, %v1897
        %v1899 = vpop.f32.mrb[0].mxu0
        %v1900 = vpop.f32.mrb[0].mxu0
        %v1901 = vpop.f32.mrb[0].mxu0
        %1902 = vdwg.mxu0
        %v1903 = vxor.u32 %v1898, 2147483648
        %v1904 = vmul.f32 %v1903, 1.442695
        %v1905 = vpow.pop %v1904
        %v1906 = vadd.f32 %v1905, 1.0
        %v1907 = vrcp.pop %v1906
        %v1908 = vmul.f32 1.0, %v1907
        %v1909 = vpack.c.bf16 %v1908, %v1908
        %v1910 = vld [vmem:[%s13] sm:$0xf]
        %v1911 = vld [vmem:[%s13 + $0x4] sm:$0xf]
        %v1912 = vld [vmem:[%s13 + $0x8] sm:$0xf]
        %v1913 = vld [vmem:[%s13 + $0xc] sm:$0xf]
        %v1914 = vld [vmem:[%s13 + $0x10] sm:$0xf]
        %v1915 = vld [vmem:[%s13 + $0x14] sm:$0xf]
        %v1916 = vld [vmem:[%s13 + $0x18] sm:$0xf]
        %v1917 = vld [vmem:[%s13 + $0x1c] sm:$0xf]
        %v1918 = vld [vmem:[%s13 + $0x20] sm:$0xf]
        %v1919 = vld [vmem:[%s13 + $0x24] sm:$0xf]
        %v1920 = vld [vmem:[%s13 + $0x28] sm:$0x3]
        %v1921 = vld [vmem:[%s14] sm:$0x1]
        %v1933 = vunpack.c.l.b16 %v1910
        %v1934 = vunpack.c.l.b16 %v1911
        %v1935 = vunpack.c.l.b16 %v1912
        %v1936 = vunpack.c.l.b16 %v1913
        %v1937 = vunpack.c.l.b16 %v1914
        %v1938 = vunpack.c.l.b16 %v1915
        %v1939 = vunpack.c.l.b16 %v1916
        %v1940 = vunpack.c.l.b16 %v1917
        %v1941 = vunpack.c.l.b16 %v1918
        %v1942 = vunpack.c.l.b16 %v1919
        %v1943 = vunpack.c.l.b16 %v1920
        %v1944 = vpack.c.b16 %v1934, %v1933
        %v1945 = vpack.c.b16 %v1936, %v1935
        %v1946 = vpack.c.b16 %v1938, %v1937
        %v1947 = vpack.c.b16 %v1940, %v1939
        %v1948 = vpack.c.b16 %v1942, %v1941
        %v1949 = vpack.c.b16 %v1943, %v1943
        %v1956 = vsel %vm564, %v1909, 0
        %vm1958 = vcmask 1041408
        %v1960 = vsel %vm1958, %v1949, 0
        %1962 = vmatprep.subr.bf16.mxu0 0
        %1963 = vmatpush1.bf16.msra.mxu0 %v1944
        %1964 = vmatprep.subr.bf16.mxu0 0
        %1965 = vmatpush1.bf16.msra.mxu0 %v1945
        %1966 = vmatprep.subr.bf16.mxu0 0
        %1967 = vmatpush1.bf16.msra.mxu0 %v1946
        %1968 = vmatprep.subr.bf16.mxu0 0
        %1969 = vmatpush1.bf16.msra.mxu0 %v1947
        %1970 = vmatprep.subr.bf16.mxu0 0
        %1971 = vmatpush1.bf16.msra.mxu0 %v1948
        %1972 = vmatprep.subr.bf16.mxu0 0
        %1973 = vmatpush1.bf16.msra.mxu0 %v1960
        %1974 = vmatprep.subr.bf16.mxu0 0
        %1975 = vmatpush1.bf16.msra.mxu0 0
        %1976 = vmatprep.subr.bf16.mxu0 0
        %1977 = vmatpush1.bf16.msra.mxu0 0
        %1978 = vmatprep.subr.bf16.mxu0 0
        %1979 = vmatpush1.bf16.msra.mxu0 0
        %1980 = vmatprep.subr.bf16.mxu0 0
        %1981 = vmatpush1.bf16.msra.mxu0 0
        %1982 = vmatprep.subr.bf16.mxu0 0
        %1983 = vmatpush1.bf16.msra.mxu0 0
        %1984 = vmatprep.subr.bf16.mxu0 0
        %1985 = vmatpush1.bf16.msra.mxu0 0
        %1986 = vmatprep.subr.bf16.mxu0 0
        %1987 = vmatpush1.bf16.msra.mxu0 0
        %1988 = vmatprep.subr.bf16.mxu0 0
        %1989 = vmatpush1.bf16.msra.mxu0 0
        %1990 = vmatprep.subr.bf16.mxu0 0
        %1991 = vmatpush1.bf16.msra.mxu0 0
        %1992 = vmatprep.subr.bf16.mxu0 0
        %1993 = vmatpush1.bf16.msra.mxu0 0
        %1994 = vmatprep.mubr.bf16.mxu0 0
        %1995 = vmatmul.mubr.bf16.gmra.mrb[0].mxu0 %v1956
        %v1996 = vpop.f32.mrb[0].mxu0
        %v1997 = vadd.f32 %v1921, %v1996
        %v1998 = vpop.f32.mrb[0].mxu0
        %v1999 = vpop.f32.mrb[0].mxu0
        %v2000 = vpop.f32.mrb[0].mxu0
        %2001 = vdwg.mxu0
        %vm2002 = vcmask 73728
        %2003 = vst.msk [vmem:[%s486] sm:$0x1] %vm2002, %v1997
        %s2004 = sand.u32 %s357, 1
        %s2005 = scalar_lea.sflag [#allocation5], %s2004
        %s2006 = sand.u32 %s357, 1
        %s2007 = scalar_lea.vmem [#allocation4], %s2006
        // Predicated region
        $region81: #{lenet_forward.1} parent=79 // pred_check
          %p2008 = pneg %p367
        $region82: #{lenet_forward.1} parent=79 // pred_check_branch
          %2010 = sbr.rel (%p2008) target = $region84
        $region83: #{lenet_forward.1} parent=79 // pred_region
          %s2012 = ssub.s32 16, 16
          %2013 = vsyncadd %s2005, %s2012
          %s2014 = smul.addr %s29, 16
          %s2015 = scalar_lea.hbm %s15, %s2014
          %s2017 = sshll.u32 %s2007, 4
          %s2018 = int_to_ptr.vmem [resolvable:$true] %s2017
          %2020 = dma.vmem_to_hbm [thread:$0]  %s2018, 16, %s2015, %s2005
        $region84: #{lenet_forward.1} parent=79 // pred_fallthru
          _
      $region80: #{lenet_forward.1} parent=5 // pred_fallthru
        _
      %p2021 = scmp.le.s32.totalorder 2, %s24
      // Predicated region
      $region85: #{lenet_forward.1} parent=5 // pred_check
        %p2022 = pneg %p2021
      $region86: #{lenet_forward.1} parent=5 // pred_check_branch
        %2024 = sbr.rel (%p2022) target = $region88
      $region87: #{lenet_forward.1} parent=5 // pred_region
        %s2025 = ssub.s32 %s24, 2
        // Predicated region
        $region89: #{lenet_forward.1} parent=87 // pred_check
          %p2026 = pneg %p373
        $region90: #{lenet_forward.1} parent=87 // pred_check_branch
          %2028 = sbr.rel (%p2026) target = $region92
        $region91: #{lenet_forward.1} parent=87 // pred_region
          %s2029 = sand.u32 %s358, 1
          %s2030 = scalar_lea.sflag [#allocation5], %s2029
          %s2031 = sand.u32 %s358, 1
          %s2032 = scalar_lea.vmem [#allocation4], %s2031
          %2033 = dma.done %s2030, 16
        $region92: #{lenet_forward.1} parent=87 // pred_fallthru
          _
      $region88: #{lenet_forward.1} parent=5 // pred_fallthru
        _
    $region6: #{lenet_forward.1} parent=1 // loop_footer
      %s28 = sadd.s32 1, %s24
    $region7: #{lenet_forward.1} parent=1 // loop_footer_branch
      %23 = sbr.rel target = $region3
    $region8: #{lenet_forward.1} parent=1 // loop_exit
      _
    %2034 = vsyncpa [#allocation5], 1
    %s2035 = scalar_lea.sflag [#allocation5], 1
    %2036 = vsyncpa %s2035, 1

</llo_original>
